<compile_context>
chip_gen: v7x
topology: tpu7x:2x2x1
jax: 0.10.0
libtpu: 0.0.40
codegen_flags: <defaults>
</compile_context>

<pallas_src>
import math

import jax
import jax.numpy as jnp
from jax.experimental import pallas as pl
from jax.experimental.pallas import tpu as pltpu

# Small synthetic config (config.GPT.N_EMBD, N_HEAD, config.DATASET.BLOCK_SIZE)
N_EMBD = 32
N_HEAD = 4
BLOCK_SIZE = 8          # sequence length T
HEAD_DIM = N_EMBD // N_HEAD
LN_EPS = 1e-5           # nn.LayerNorm default eps

# Matmul operand dtype: bf16 operands / f32 accumulation on the MXU (native on
# v6e/v7x, also supported and faster on v5e's MXU).  All VPU/EUP math
# (LayerNorm, softmax, GELU, residuals) stays f32.
MATMUL_DTYPE = jnp.bfloat16

# Sequences per grid step.  256 keeps the per-step intermediates (~30-40 MiB
# with the lane-padded (G,8,8) attention tensors) inside v7x's 64 MiB VMEM;
# v5e/v6e (128 MiB physical) can raise this to 512-1024 with a larger limit.
MAX_B_BLK = 256
VMEM_LIMIT_BYTES = 56 * 1024 * 1024   # > 16/32 MiB scoped defaults, < v7x 64 MiB


def _layernorm(x, w, b):
    mu = jnp.mean(x, axis=-1, keepdims=True)
    var = jnp.mean((x - mu) ** 2, axis=-1, keepdims=True)
    return (x - mu) * jax.lax.rsqrt(var + LN_EPS) * w + b


def _gelu_tanh(x):
    # nn.GELU(approximate='tanh')
    c = math.sqrt(2.0 / math.pi)
    return 0.5 * x * (1.0 + jnp.tanh(c * (x + 0.044715 * x * x * x)))


def _mm(a, b):
    return jnp.dot(a.astype(MATMUL_DTYPE), b.astype(MATMUL_DTYPE),
                   preferred_element_type=jnp.float32)


def block_kernel(x_ref,
                 ln1_w_ref, ln1_b_ref,
                 w_attn_ref, b_attn_ref,
                 w_aproj_ref, b_aproj_ref,
                 ln2_w_ref, ln2_b_ref,
                 w_fc_ref, b_fc_ref,
                 w_mproj_ref, b_mproj_ref,
                 out_ref):
    R, C = x_ref.shape              # R = b_blk * T (2D activation slab)
    T = BLOCK_SIZE
    D = HEAD_DIM
    b_blk = R // T

    x = x_ref[...].astype(jnp.float32)                            # (R, C)

    # ---------------- attention branch: x + c_proj(attn(ln_1(x))) ----------------
    h = _layernorm(x, ln1_w_ref[...], ln1_b_ref[...])
    qkv = _mm(h, w_attn_ref[...]) + b_attn_ref[...]               # (R, 3C)
    q = qkv[:, 0 * C:1 * C]   # 1/sqrt(head_dim) already folded into w_attn/b_attn
    k = qkv[:, 1 * C:2 * C]
    v = qkv[:, 2 * C:3 * C]

    def split_heads(z):
        # (R, C) -> (H*b_blk, T, D): heads folded into the leading batch axis
        # (head-major), so one contraction / one softmax covers every head.
        return jnp.concatenate(
            [z[:, hd * D:(hd + 1) * D].reshape(b_blk, T, D)
             for hd in range(N_HEAD)], axis=0)

    qg = split_heads(q).astype(MATMUL_DTYPE)
    kg = split_heads(k).astype(MATMUL_DTYPE)
    vg = split_heads(v).astype(MATMUL_DTYPE)

    row = jax.lax.broadcasted_iota(jnp.int32, (T, T), 0)
    col = jax.lax.broadcasted_iota(jnp.int32, (T, T), 1)
    causal = (row >= col)[None]                                   # (1, T, T)

    # One batched contraction over all (head, sequence) pairs, one mask, one
    # softmax.  TODO(synk): at T=D=8 these are tiny per-batch matmuls; if
    # profiling shows them dominating, re-express as VPU broadcast-multiply +
    # 8-term reductions to keep the MXU free for the dense QKV/FC/proj matmuls.
    s = jnp.einsum('gtd,gsd->gts', qg, kg,
                   preferred_element_type=jnp.float32)            # (G, T, T)
    s = jnp.where(causal, s, -jnp.inf)
    s = s - jnp.max(s, axis=-1, keepdims=True)
    p = jnp.exp(s)
    p = p * pl.reciprocal(jnp.sum(p, axis=-1, keepdims=True), approx=False)
    yg = jnp.einsum('gts,gsd->gtd', p.astype(MATMUL_DTYPE), vg,
                    preferred_element_type=jnp.float32)           # (G, T, D)

    # Reassemble heads along lanes -> (R, C), single K=32 output projection
    # (lane concat on the mostly-idle XLU instead of four K=8 MXU passes).
    y_cat = jnp.concatenate(
        [yg[hd * b_blk:(hd + 1) * b_blk].reshape(R, D) for hd in range(N_HEAD)],
        axis=-1)                                                  # (R, C)
    x = x + _mm(y_cat, w_aproj_ref[...]) + b_aproj_ref[...]

    # ---------------- MLP branch: x + c_proj(gelu(c_fc(ln_2(x)))) ----------------
    h2 = _layernorm(x, ln2_w_ref[...], ln2_b_ref[...])
    f = _gelu_tanh(_mm(h2, w_fc_ref[...]) + b_fc_ref[...])        # (R, 4C)
    x = x + _mm(f, w_mproj_ref[...]) + b_mproj_ref[...]

    # TODO(synk): with C=32 the store uses only 32/128 lanes; a fully lane-dense
    # (b_blk, T*C=256) output layout would need an in-kernel sublane->lane
    # relayout — skipped to keep the store path simple and compile-safe.
    out_ref[...] = x.astype(out_ref.dtype)


def prepare_params(params):
    """One-time parameter prep (call once, outside the forward path):
    fold 1/sqrt(head_dim) into the Q columns of the QKV projection and cast the
    matmul weight matrices to MATMUL_DTYPE (biases / LN params stay f32)."""
    C = N_EMBD
    scale = 1.0 / math.sqrt(HEAD_DIM)
    w_attn = params["w_attn"].at[:, :C].multiply(scale)
    b_attn = params["b_attn"].at[:, :C].multiply(scale)
    return (
        params["ln1_w"], params["ln1_b"],
        w_attn.astype(MATMUL_DTYPE), b_attn,
        params["w_aproj"].astype(MATMUL_DTYPE), params["b_aproj"],
        params["ln2_w"], params["ln2_b"],
        params["w_fc"].astype(MATMUL_DTYPE), params["b_fc"],
        params["w_mproj"].astype(MATMUL_DTYPE), params["b_mproj"],
    )


def block_forward(x, prepared_params, *, b_blk=None):
    B, T, C = x.shape
    assert T == BLOCK_SIZE and C == N_EMBD
    if b_blk is None:
        b_blk = min(B, MAX_B_BLK)
    rows_blk = b_blk * T

    # Wrapper-level 2D flatten (free metadata reshape): the kernel sees
    # (b_blk*T, C) slabs, no in-kernel reshape of the activation block.
    x2 = x.reshape(B * T, C)
    grid = (pl.cdiv(B, b_blk),)

    def resident_spec(arr):
        # Constant index map -> weight stays resident in VMEM across the grid.
        nd = arr.ndim
        return pl.BlockSpec(arr.shape, lambda b, _nd=nd: (0,) * _nd)

    grid_spec = pltpu.PrefetchScalarGridSpec(
        num_scalar_prefetch=0,
        grid=grid,
        in_specs=[pl.BlockSpec((rows_blk, C), lambda b: (b, 0))]
                 + [resident_spec(p) for p in prepared_params],
        out_specs=pl.BlockSpec((rows_blk, C), lambda b: (b, 0)),
    )

    out2 = pl.pallas_call(
        block_kernel,
        out_shape=jax.ShapeDtypeStruct((B * T, C), x.dtype),
        grid_spec=grid_spec,
        compiler_params=pltpu.CompilerParams(
            dimension_semantics=("parallel",),
            vmem_limit_bytes=VMEM_LIMIT_BYTES),
    )(x2, *prepared_params)
    return out2.reshape(B, T, C)


def block_reference(x, p):
    """Plain-JAX f32 reference with the PyTorch module's semantics."""
    B, T, C = x.shape
    h = _layernorm(x, p["ln1_w"][0], p["ln1_b"][0])
    qkv = h @ p["w_attn"] + p["b_attn"][0]
    q, k, v = jnp.split(qkv, 3, axis=-1)
    def heads(z):  # (B,T,C) -> (B,H,T,D)
        return z.reshape(B, T, N_HEAD, HEAD_DIM).transpose(0, 2, 1, 3)
    q, k, v = heads(q), heads(k), heads(v)
    s = jnp.einsum("bhtd,bhsd->bhts", q, k) / math.sqrt(HEAD_DIM)
    mask = jnp.tril(jnp.ones((T, T), bool))
    s = jnp.where(mask, s, -jnp.inf)
    a = jax.nn.softmax(s, axis=-1)
    y = jnp.einsum("bhts,bhsd->bhtd", a, v).transpose(0, 2, 1, 3).reshape(B, T, C)
    y = y @ p["w_aproj"] + p["b_aproj"][0]
    x = x + y
    h2 = _layernorm(x, p["ln2_w"][0], p["ln2_b"][0])
    f = _gelu_tanh(h2 @ p["w_fc"] + p["b_fc"][0])
    m = f @ p["w_mproj"] + p["b_mproj"][0]
    return x + m


def init_params(key):
    C = N_EMBD
    ks = jax.random.split(key, 6)
    s = 0.02
    return {
        # LayerNorms (weight=1, bias=0 like nn.LayerNorm default)
        "ln1_w": jnp.ones((1, C), jnp.float32),
        "ln1_b": jnp.zeros((1, C), jnp.float32),
        "ln2_w": jnp.ones((1, C), jnp.float32),
        "ln2_b": jnp.zeros((1, C), jnp.float32),
        # attention: weights stored pre-transposed so kernel does x @ W
        "w_attn": s * jax.random.normal(ks[0], (C, 3 * C), jnp.float32),
        "b_attn": s * jax.random.normal(ks[1], (1, 3 * C), jnp.float32),
        "w_aproj": s * jax.random.normal(ks[2], (C, C), jnp.float32),
        "b_aproj": jnp.zeros((1, C), jnp.float32),
        # MLP
        "w_fc": s * jax.random.normal(ks[3], (C, 4 * C), jnp.float32),
        "b_fc": s * jax.random.normal(ks[4], (1, 4 * C), jnp.float32),
        "w_mproj": s * jax.random.normal(ks[5], (4 * C, C), jnp.float32),
        "b_mproj": jnp.zeros((1, C), jnp.float32),
    }


if __name__ == "__main__":
    key = jax.random.PRNGKey(0)
    kx, kp = jax.random.split(key)
    B, T, C = 4, BLOCK_SIZE, N_EMBD
    x = jax.random.normal(kx, (B, T, C), jnp.float32)
    params = init_params(kp)
    prepared = prepare_params(params)        # one-time scale fold + bf16 cast

    # b_blk=2 -> grid of 2 steps: exercises the pipelined/parallel grid axis.
    out = jax.block_until_ready(block_forward(x, prepared, b_blk=2))
    ref = block_reference(x, params)

    assert out.shape == (B, T, C)
    # Tolerance covers the bf16 matmul operands (f32 accumulation); with
    # MATMUL_DTYPE = float32 the kernel matches the reference to ~1e-5.
    assert jnp.allclose(out, ref, atol=2e-2, rtol=2e-2), (
        "mismatch vs reference: max abs err "
        f"{float(jnp.max(jnp.abs(out - ref)))}")
    print("KERNEL_OK")
</pallas_src>

<mosaic_0001>
module attributes {stable_mosaic.version = 11 : i64} {
  func.func @block_kernel(%arg0: i32, %arg1: memref<16x32xf32, #tpu.memory_space<vmem>>, %arg2: memref<1x32xf32, #tpu.memory_space<vmem>>, %arg3: memref<1x32xf32, #tpu.memory_space<vmem>>, %arg4: memref<32x96xbf16, #tpu.memory_space<vmem>>, %arg5: memref<1x96xf32, #tpu.memory_space<vmem>>, %arg6: memref<32x32xbf16, #tpu.memory_space<vmem>>, %arg7: memref<1x32xf32, #tpu.memory_space<vmem>>, %arg8: memref<1x32xf32, #tpu.memory_space<vmem>>, %arg9: memref<1x32xf32, #tpu.memory_space<vmem>>, %arg10: memref<32x128xbf16, #tpu.memory_space<vmem>>, %arg11: memref<1x128xf32, #tpu.memory_space<vmem>>, %arg12: memref<128x32xbf16, #tpu.memory_space<vmem>>, %arg13: memref<1x32xf32, #tpu.memory_space<vmem>>, %arg14: memref<16x32xf32, #tpu.memory_space<vmem>>) attributes {dimension_semantics = [#tpu.dimension_semantics<parallel>], iteration_bounds = array<i64: 2>, scalar_prefetch = 0 : i64, scratch_operands = 0 : i64, tpu.core_type = #tpu.core_type<tc>, window_params = [{transform_indices = @transform_0, window_bounds = array<i64: 16, 32>}, {pipeline_mode = #tpu.pipeline_mode<synchronous>, transform_indices = @transform_1, window_bounds = array<i64: 1, 32>}, {pipeline_mode = #tpu.pipeline_mode<synchronous>, transform_indices = @transform_2, window_bounds = array<i64: 1, 32>}, {pipeline_mode = #tpu.pipeline_mode<synchronous>, transform_indices = @transform_3, window_bounds = array<i64: 32, 96>}, {pipeline_mode = #tpu.pipeline_mode<synchronous>, transform_indices = @transform_4, window_bounds = array<i64: 1, 96>}, {pipeline_mode = #tpu.pipeline_mode<synchronous>, transform_indices = @transform_5, window_bounds = array<i64: 32, 32>}, {pipeline_mode = #tpu.pipeline_mode<synchronous>, transform_indices = @transform_6, window_bounds = array<i64: 1, 32>}, {pipeline_mode = #tpu.pipeline_mode<synchronous>, transform_indices = @transform_7, window_bounds = array<i64: 1, 32>}, {pipeline_mode = #tpu.pipeline_mode<synchronous>, transform_indices = @transform_8, window_bounds = array<i64: 1, 32>}, {pipeline_mode = #tpu.pipeline_mode<synchronous>, transform_indices = @transform_9, window_bounds = array<i64: 32, 128>}, {pipeline_mode = #tpu.pipeline_mode<synchronous>, transform_indices = @transform_10, window_bounds = array<i64: 1, 128>}, {pipeline_mode = #tpu.pipeline_mode<synchronous>, transform_indices = @transform_11, window_bounds = array<i64: 128, 32>}, {pipeline_mode = #tpu.pipeline_mode<synchronous>, transform_indices = @transform_12, window_bounds = array<i64: 1, 32>}, {transform_indices = @transform_13, window_bounds = array<i64: 16, 32>}]} {
    %c0 = arith.constant 0 : index
    %c0_0 = arith.constant 0 : index
    %0 = vector.load %arg1[%c0, %c0_0] : memref<16x32xf32, #tpu.memory_space<vmem>>, vector<16x32xf32>
    %c0_1 = arith.constant 0 : index
    %c0_2 = arith.constant 0 : index
    %1 = vector.load %arg2[%c0_1, %c0_2] : memref<1x32xf32, #tpu.memory_space<vmem>>, vector<1x32xf32>
    %c0_3 = arith.constant 0 : index
    %c0_4 = arith.constant 0 : index
    %2 = vector.load %arg3[%c0_3, %c0_4] : memref<1x32xf32, #tpu.memory_space<vmem>>, vector<1x32xf32>
    %cst = arith.constant dense<0.000000e+00> : vector<16xf32>
    %3 = vector.multi_reduction <add>, %0, %cst [1] : vector<16x32xf32> to vector<16xf32>
    %4 = vector.shape_cast %3 : vector<16xf32> to vector<16x1xf32>
    %cst_5 = arith.constant 3.200000e+01 : f32
    %5 = vector.broadcast %cst_5 : f32 to vector<16x1xf32>
    %6 = arith.divf %4, %5 : vector<16x1xf32>
    %7 = vector.broadcast %6 : vector<16x1xf32> to vector<16x32xf32>
    %8 = arith.subf %0, %7 : vector<16x32xf32>
    %9 = arith.mulf %8, %8 : vector<16x32xf32>
    %cst_6 = arith.constant dense<0.000000e+00> : vector<16xf32>
    %10 = vector.multi_reduction <add>, %9, %cst_6 [1] : vector<16x32xf32> to vector<16xf32>
    %11 = vector.shape_cast %10 : vector<16xf32> to vector<16x1xf32>
    %cst_7 = arith.constant 3.200000e+01 : f32
    %12 = vector.broadcast %cst_7 : f32 to vector<16x1xf32>
    %13 = arith.divf %11, %12 : vector<16x1xf32>
    %14 = vector.broadcast %6 : vector<16x1xf32> to vector<16x32xf32>
    %15 = arith.subf %0, %14 : vector<16x32xf32>
    %cst_8 = arith.constant 9.99999974E-6 : f32
    %16 = vector.broadcast %cst_8 : f32 to vector<16x1xf32>
    %17 = arith.addf %13, %16 : vector<16x1xf32>
    %18 = math.rsqrt %17 : vector<16x1xf32>
    %19 = vector.broadcast %18 : vector<16x1xf32> to vector<16x32xf32>
    %20 = arith.mulf %15, %19 : vector<16x32xf32>
    %21 = vector.broadcast %1 : vector<1x32xf32> to vector<16x32xf32>
    %22 = arith.mulf %20, %21 : vector<16x32xf32>
    %23 = vector.broadcast %2 : vector<1x32xf32> to vector<16x32xf32>
    %24 = arith.addf %22, %23 : vector<16x32xf32>
    %c0_9 = arith.constant 0 : index
    %c0_10 = arith.constant 0 : index
    %25 = vector.load %arg4[%c0_9, %c0_10] : memref<32x96xbf16, #tpu.memory_space<vmem>>, vector<32x96xbf16>
    %26 = arith.truncf %24 : vector<16x32xf32> to vector<16x32xbf16>
    %cst_11 = arith.constant dense<0.000000e+00> : vector<16x96xf32>
    %27 = tpu.matmul %26, %25, %cst_11 {dimension_numbers = #tpu.dot_dimension_numbers<[1], [0], [0], [1], [0, 0, 1, 1], [], []>} : vector<16x32xbf16>, vector<32x96xbf16>, vector<16x96xf32> -> vector<16x96xf32>
    %c0_12 = arith.constant 0 : index
    %c0_13 = arith.constant 0 : index
    %28 = vector.load %arg5[%c0_12, %c0_13] : memref<1x96xf32, #tpu.memory_space<vmem>>, vector<1x96xf32>
    %29 = vector.broadcast %28 : vector<1x96xf32> to vector<16x96xf32>
    %30 = arith.addf %27, %29 : vector<16x96xf32>
    %31 = vector.extract_strided_slice %30 {offsets = [0, 0], sizes = [16, 32], strides = [1, 1]} : vector<16x96xf32> to vector<16x32xf32>
    %32 = vector.extract_strided_slice %30 {offsets = [0, 32], sizes = [16, 32], strides = [1, 1]} : vector<16x96xf32> to vector<16x32xf32>
    %33 = vector.extract_strided_slice %30 {offsets = [0, 64], sizes = [16, 32], strides = [1, 1]} : vector<16x96xf32> to vector<16x32xf32>
    %34 = vector.extract_strided_slice %31 {offsets = [0, 0], sizes = [16, 8], strides = [1, 1]} : vector<16x32xf32> to vector<16x8xf32>
    %35 = vector.shape_cast %34 : vector<16x8xf32> to vector<2x8x8xf32>
    %36 = vector.extract_strided_slice %31 {offsets = [0, 8], sizes = [16, 8], strides = [1, 1]} : vector<16x32xf32> to vector<16x8xf32>
    %37 = vector.shape_cast %36 : vector<16x8xf32> to vector<2x8x8xf32>
    %38 = vector.extract_strided_slice %31 {offsets = [0, 16], sizes = [16, 8], strides = [1, 1]} : vector<16x32xf32> to vector<16x8xf32>
    %39 = vector.shape_cast %38 : vector<16x8xf32> to vector<2x8x8xf32>
    %40 = vector.extract_strided_slice %31 {offsets = [0, 24], sizes = [16, 8], strides = [1, 1]} : vector<16x32xf32> to vector<16x8xf32>
    %41 = vector.shape_cast %40 : vector<16x8xf32> to vector<2x8x8xf32>
    %42 = tpu.concatenate %35, %37, %39, %41 in 0 : vector<2x8x8xf32>, vector<2x8x8xf32>, vector<2x8x8xf32>, vector<2x8x8xf32> -> vector<8x8x8xf32>
    %43 = arith.truncf %42 : vector<8x8x8xf32> to vector<8x8x8xbf16>
    %44 = vector.extract_strided_slice %32 {offsets = [0, 0], sizes = [16, 8], strides = [1, 1]} : vector<16x32xf32> to vector<16x8xf32>
    %45 = vector.shape_cast %44 : vector<16x8xf32> to vector<2x8x8xf32>
    %46 = vector.extract_strided_slice %32 {offsets = [0, 8], sizes = [16, 8], strides = [1, 1]} : vector<16x32xf32> to vector<16x8xf32>
    %47 = vector.shape_cast %46 : vector<16x8xf32> to vector<2x8x8xf32>
    %48 = vector.extract_strided_slice %32 {offsets = [0, 16], sizes = [16, 8], strides = [1, 1]} : vector<16x32xf32> to vector<16x8xf32>
    %49 = vector.shape_cast %48 : vector<16x8xf32> to vector<2x8x8xf32>
    %50 = vector.extract_strided_slice %32 {offsets = [0, 24], sizes = [16, 8], strides = [1, 1]} : vector<16x32xf32> to vector<16x8xf32>
    %51 = vector.shape_cast %50 : vector<16x8xf32> to vector<2x8x8xf32>
    %52 = tpu.concatenate %45, %47, %49, %51 in 0 : vector<2x8x8xf32>, vector<2x8x8xf32>, vector<2x8x8xf32>, vector<2x8x8xf32> -> vector<8x8x8xf32>
    %53 = arith.truncf %52 : vector<8x8x8xf32> to vector<8x8x8xbf16>
    %54 = vector.extract_strided_slice %33 {offsets = [0, 0], sizes = [16, 8], strides = [1, 1]} : vector<16x32xf32> to vector<16x8xf32>
    %55 = vector.shape_cast %54 : vector<16x8xf32> to vector<2x8x8xf32>
    %56 = vector.extract_strided_slice %33 {offsets = [0, 8], sizes = [16, 8], strides = [1, 1]} : vector<16x32xf32> to vector<16x8xf32>
    %57 = vector.shape_cast %56 : vector<16x8xf32> to vector<2x8x8xf32>
    %58 = vector.extract_strided_slice %33 {offsets = [0, 16], sizes = [16, 8], strides = [1, 1]} : vector<16x32xf32> to vector<16x8xf32>
    %59 = vector.shape_cast %58 : vector<16x8xf32> to vector<2x8x8xf32>
    %60 = vector.extract_strided_slice %33 {offsets = [0, 24], sizes = [16, 8], strides = [1, 1]} : vector<16x32xf32> to vector<16x8xf32>
    %61 = vector.shape_cast %60 : vector<16x8xf32> to vector<2x8x8xf32>
    %62 = tpu.concatenate %55, %57, %59, %61 in 0 : vector<2x8x8xf32>, vector<2x8x8xf32>, vector<2x8x8xf32>, vector<2x8x8xf32> -> vector<8x8x8xf32>
    %63 = arith.truncf %62 : vector<8x8x8xf32> to vector<8x8x8xbf16>
    %64 = tpu.iota {dimensions = array<i32: 0>} : vector<8x8xi32>
    %65 = tpu.iota {dimensions = array<i32: 1>} : vector<8x8xi32>
    %66 = arith.cmpi sge, %64, %65 : vector<8x8xi32>
    %67 = vector.shape_cast %66 : vector<8x8xi1> to vector<1x8x8xi1>
    "tpu.trace_start"() <{level = 10 : i32, message = "gtd,gsd->gts"}> : () -> ()
    %cst_14 = arith.constant dense<0.000000e+00> : vector<8x8x8xf32>
    %68 = tpu.matmul %43, %53, %cst_14 {dimension_numbers = #tpu.dot_dimension_numbers<[2], [2], [1], [1], [0, 0, 0, 1, 1, 1], [0], [0]>} : vector<8x8x8xbf16>, vector<8x8x8xbf16>, vector<8x8x8xf32> -> vector<8x8x8xf32>
    %cst_15 = arith.constant 0xFF800000 : f32
    "tpu.trace_stop"() : () -> ()
    %69 = vector.shape_cast %67 : vector<1x8x8xi1> to vector<1x8x8xi1>
    %70 = vector.broadcast %69 : vector<1x8x8xi1> to vector<8x8x8xi1>
    %71 = vector.broadcast %cst_15 : f32 to vector<8x8x8xf32>
    %72 = arith.select %70, %68, %71 : vector<8x8x8xi1>, vector<8x8x8xf32>
    %cst_16 = arith.constant dense<0xFF800000> : vector<8x8xf32>
    %73 = vector.multi_reduction <maximumf>, %72, %cst_16 [2] : vector<8x8x8xf32> to vector<8x8xf32>
    %74 = vector.shape_cast %73 : vector<8x8xf32> to vector<8x8x1xf32>
    %75 = vector.broadcast %74 : vector<8x8x1xf32> to vector<8x8x8xf32>
    %76 = arith.subf %72, %75 : vector<8x8x8xf32>
    %77 = math.exp %76 : vector<8x8x8xf32>
    %cst_17 = arith.constant dense<0.000000e+00> : vector<8x8xf32>
    %78 = vector.multi_reduction <add>, %77, %cst_17 [2] : vector<8x8x8xf32> to vector<8x8xf32>
    %79 = vector.shape_cast %78 : vector<8x8xf32> to vector<8x8x1xf32>
    %80 = tpu.reciprocal %79 : vector<8x8x1xf32> -> vector<8x8x1xf32>
    %81 = vector.broadcast %80 : vector<8x8x1xf32> to vector<8x8x8xf32>
    %82 = arith.mulf %77, %81 : vector<8x8x8xf32>
    %83 = arith.truncf %82 : vector<8x8x8xf32> to vector<8x8x8xbf16>
    "tpu.trace_start"() <{level = 10 : i32, message = "gts,gsd->gtd"}> : () -> ()
    %cst_18 = arith.constant dense<0.000000e+00> : vector<8x8x8xf32>
    %84 = tpu.matmul %83, %63, %cst_18 {dimension_numbers = #tpu.dot_dimension_numbers<[2], [1], [1], [2], [0, 0, 0, 1, 1, 2], [0], [0]>} : vector<8x8x8xbf16>, vector<8x8x8xbf16>, vector<8x8x8xf32> -> vector<8x8x8xf32>
    "tpu.trace_stop"() : () -> ()
    %85 = vector.extract_strided_slice %84 {offsets = [0, 0, 0], sizes = [2, 8, 8], strides = [1, 1, 1]} : vector<8x8x8xf32> to vector<2x8x8xf32>
    %86 = vector.shape_cast %85 : vector<2x8x8xf32> to vector<16x8xf32>
    %87 = vector.extract_strided_slice %84 {offsets = [2, 0, 0], sizes = [2, 8, 8], strides = [1, 1, 1]} : vector<8x8x8xf32> to vector<2x8x8xf32>
    %88 = vector.shape_cast %87 : vector<2x8x8xf32> to vector<16x8xf32>
    %89 = vector.extract_strided_slice %84 {offsets = [4, 0, 0], sizes = [2, 8, 8], strides = [1, 1, 1]} : vector<8x8x8xf32> to vector<2x8x8xf32>
    %90 = vector.shape_cast %89 : vector<2x8x8xf32> to vector<16x8xf32>
    %91 = vector.extract_strided_slice %84 {offsets = [6, 0, 0], sizes = [2, 8, 8], strides = [1, 1, 1]} : vector<8x8x8xf32> to vector<2x8x8xf32>
    %92 = vector.shape_cast %91 : vector<2x8x8xf32> to vector<16x8xf32>
    %93 = tpu.concatenate %86, %88, %90, %92 in 1 : vector<16x8xf32>, vector<16x8xf32>, vector<16x8xf32>, vector<16x8xf32> -> vector<16x32xf32>
    %c0_19 = arith.constant 0 : index
    %c0_20 = arith.constant 0 : index
    %94 = vector.load %arg6[%c0_19, %c0_20] : memref<32x32xbf16, #tpu.memory_space<vmem>>, vector<32x32xbf16>
    %95 = arith.truncf %93 : vector<16x32xf32> to vector<16x32xbf16>
    %cst_21 = arith.constant dense<0.000000e+00> : vector<16x32xf32>
    %96 = tpu.matmul %95, %94, %cst_21 {dimension_numbers = #tpu.dot_dimension_numbers<[1], [0], [0], [1], [0, 0, 1, 1], [], []>} : vector<16x32xbf16>, vector<32x32xbf16>, vector<16x32xf32> -> vector<16x32xf32>
    %97 = arith.addf %0, %96 : vector<16x32xf32>
    %c0_22 = arith.constant 0 : index
    %c0_23 = arith.constant 0 : index
    %98 = vector.load %arg7[%c0_22, %c0_23] : memref<1x32xf32, #tpu.memory_space<vmem>>, vector<1x32xf32>
    %99 = vector.broadcast %98 : vector<1x32xf32> to vector<16x32xf32>
    %100 = arith.addf %97, %99 : vector<16x32xf32>
    %c0_24 = arith.constant 0 : index
    %c0_25 = arith.constant 0 : index
    %101 = vector.load %arg8[%c0_24, %c0_25] : memref<1x32xf32, #tpu.memory_space<vmem>>, vector<1x32xf32>
    %c0_26 = arith.constant 0 : index
    %c0_27 = arith.constant 0 : index
    %102 = vector.load %arg9[%c0_26, %c0_27] : memref<1x32xf32, #tpu.memory_space<vmem>>, vector<1x32xf32>
    %cst_28 = arith.constant dense<0.000000e+00> : vector<16xf32>
    %103 = vector.multi_reduction <add>, %100, %cst_28 [1] : vector<16x32xf32> to vector<16xf32>
    %104 = vector.shape_cast %103 : vector<16xf32> to vector<16x1xf32>
    %cst_29 = arith.constant 3.200000e+01 : f32
    %105 = vector.broadcast %cst_29 : f32 to vector<16x1xf32>
    %106 = arith.divf %104, %105 : vector<16x1xf32>
    %107 = vector.broadcast %106 : vector<16x1xf32> to vector<16x32xf32>
    %108 = arith.subf %100, %107 : vector<16x32xf32>
    %109 = arith.mulf %108, %108 : vector<16x32xf32>
    %cst_30 = arith.constant dense<0.000000e+00> : vector<16xf32>
    %110 = vector.multi_reduction <add>, %109, %cst_30 [1] : vector<16x32xf32> to vector<16xf32>
    %111 = vector.shape_cast %110 : vector<16xf32> to vector<16x1xf32>
    %cst_31 = arith.constant 3.200000e+01 : f32
    %112 = vector.broadcast %cst_31 : f32 to vector<16x1xf32>
    %113 = arith.divf %111, %112 : vector<16x1xf32>
    %114 = vector.broadcast %106 : vector<16x1xf32> to vector<16x32xf32>
    %115 = arith.subf %100, %114 : vector<16x32xf32>
    %cst_32 = arith.constant 9.99999974E-6 : f32
    %116 = vector.broadcast %cst_32 : f32 to vector<16x1xf32>
    %117 = arith.addf %113, %116 : vector<16x1xf32>
    %118 = math.rsqrt %117 : vector<16x1xf32>
    %119 = vector.broadcast %118 : vector<16x1xf32> to vector<16x32xf32>
    %120 = arith.mulf %115, %119 : vector<16x32xf32>
    %121 = vector.broadcast %101 : vector<1x32xf32> to vector<16x32xf32>
    %122 = arith.mulf %120, %121 : vector<16x32xf32>
    %123 = vector.broadcast %102 : vector<1x32xf32> to vector<16x32xf32>
    %124 = arith.addf %122, %123 : vector<16x32xf32>
    %c0_33 = arith.constant 0 : index
    %c0_34 = arith.constant 0 : index
    %125 = vector.load %arg10[%c0_33, %c0_34] : memref<32x128xbf16, #tpu.memory_space<vmem>>, vector<32x128xbf16>
    %126 = arith.truncf %124 : vector<16x32xf32> to vector<16x32xbf16>
    %cst_35 = arith.constant dense<0.000000e+00> : vector<16x128xf32>
    %127 = tpu.matmul %126, %125, %cst_35 {dimension_numbers = #tpu.dot_dimension_numbers<[1], [0], [0], [1], [0, 0, 1, 1], [], []>} : vector<16x32xbf16>, vector<32x128xbf16>, vector<16x128xf32> -> vector<16x128xf32>
    %c0_36 = arith.constant 0 : index
    %c0_37 = arith.constant 0 : index
    %128 = vector.load %arg11[%c0_36, %c0_37] : memref<1x128xf32, #tpu.memory_space<vmem>>, vector<1x128xf32>
    %129 = vector.broadcast %128 : vector<1x128xf32> to vector<16x128xf32>
    %130 = arith.addf %127, %129 : vector<16x128xf32>
    %cst_38 = arith.constant 5.000000e-01 : f32
    %131 = vector.broadcast %cst_38 : f32 to vector<16x128xf32>
    %132 = arith.mulf %131, %130 : vector<16x128xf32>
    %cst_39 = arith.constant 4.471500e-02 : f32
    %133 = vector.broadcast %cst_39 : f32 to vector<16x128xf32>
    %134 = arith.mulf %133, %130 : vector<16x128xf32>
    %135 = arith.mulf %134, %130 : vector<16x128xf32>
    %136 = arith.mulf %135, %130 : vector<16x128xf32>
    %137 = arith.addf %130, %136 : vector<16x128xf32>
    %cst_40 = arith.constant 0.797884583 : f32
    %138 = vector.broadcast %cst_40 : f32 to vector<16x128xf32>
    %139 = arith.mulf %138, %137 : vector<16x128xf32>
    %140 = math.tanh %139 : vector<16x128xf32>
    %cst_41 = arith.constant 1.000000e+00 : f32
    %141 = vector.broadcast %cst_41 : f32 to vector<16x128xf32>
    %142 = arith.addf %141, %140 : vector<16x128xf32>
    %143 = arith.mulf %132, %142 : vector<16x128xf32>
    %c0_42 = arith.constant 0 : index
    %c0_43 = arith.constant 0 : index
    %144 = vector.load %arg12[%c0_42, %c0_43] : memref<128x32xbf16, #tpu.memory_space<vmem>>, vector<128x32xbf16>
    %145 = arith.truncf %143 : vector<16x128xf32> to vector<16x128xbf16>
    %cst_44 = arith.constant dense<0.000000e+00> : vector<16x32xf32>
    %146 = tpu.matmul %145, %144, %cst_44 {dimension_numbers = #tpu.dot_dimension_numbers<[1], [0], [0], [1], [0, 0, 1, 1], [], []>} : vector<16x128xbf16>, vector<128x32xbf16>, vector<16x32xf32> -> vector<16x32xf32>
    %147 = arith.addf %100, %146 : vector<16x32xf32>
    %c0_45 = arith.constant 0 : index
    %c0_46 = arith.constant 0 : index
    %148 = vector.load %arg13[%c0_45, %c0_46] : memref<1x32xf32, #tpu.memory_space<vmem>>, vector<1x32xf32>
    %149 = vector.broadcast %148 : vector<1x32xf32> to vector<16x32xf32>
    %150 = arith.addf %147, %149 : vector<16x32xf32>
    %c0_47 = arith.constant 0 : index
    %c0_48 = arith.constant 0 : index
    %151 = vector.load %arg14[%c0_47, %c0_48] : memref<16x32xf32, #tpu.memory_space<vmem>>, vector<16x32xf32>
    tpu.vector_store %arg14[%c0_47, %c0_48], %150 {strides = array<i32>} : memref<16x32xf32, #tpu.memory_space<vmem>>, vector<16x32xf32>,
    return
  }
  func.func @transform_0(%arg0: i32) -> (i32, i32) {
    %c0_i32 = arith.constant 0 : i32
    %c0_i32_0 = arith.constant 0 : i32
    return %arg0, %c0_i32 : i32, i32
  }
  func.func @transform_1(%arg0: i32) -> (i32, i32) {
    %c0_i32 = arith.constant 0 : i32
    %c0_i32_0 = arith.constant 0 : i32
    %c0_i32_1 = arith.constant 0 : i32
    return %c0_i32, %c0_i32_0 : i32, i32
  }
  func.func @transform_2(%arg0: i32) -> (i32, i32) {
    %c0_i32 = arith.constant 0 : i32
    %c0_i32_0 = arith.constant 0 : i32
    %c0_i32_1 = arith.constant 0 : i32
    return %c0_i32, %c0_i32_0 : i32, i32
  }
  func.func @transform_3(%arg0: i32) -> (i32, i32) {
    %c0_i32 = arith.constant 0 : i32
    %c0_i32_0 = arith.constant 0 : i32
    %c0_i32_1 = arith.constant 0 : i32
    return %c0_i32, %c0_i32_0 : i32, i32
  }
  func.func @transform_4(%arg0: i32) -> (i32, i32) {
    %c0_i32 = arith.constant 0 : i32
    %c0_i32_0 = arith.constant 0 : i32
    %c0_i32_1 = arith.constant 0 : i32
    return %c0_i32, %c0_i32_0 : i32, i32
  }
  func.func @transform_5(%arg0: i32) -> (i32, i32) {
    %c0_i32 = arith.constant 0 : i32
    %c0_i32_0 = arith.constant 0 : i32
    %c0_i32_1 = arith.constant 0 : i32
    return %c0_i32, %c0_i32_0 : i32, i32
  }
  func.func @transform_6(%arg0: i32) -> (i32, i32) {
    %c0_i32 = arith.constant 0 : i32
    %c0_i32_0 = arith.constant 0 : i32
    %c0_i32_1 = arith.constant 0 : i32
    return %c0_i32, %c0_i32_0 : i32, i32
  }
  func.func @transform_7(%arg0: i32) -> (i32, i32) {
    %c0_i32 = arith.constant 0 : i32
    %c0_i32_0 = arith.constant 0 : i32
    %c0_i32_1 = arith.constant 0 : i32
    return %c0_i32, %c0_i32_0 : i32, i32
  }
  func.func @transform_8(%arg0: i32) -> (i32, i32) {
    %c0_i32 = arith.constant 0 : i32
    %c0_i32_0 = arith.constant 0 : i32
    %c0_i32_1 = arith.constant 0 : i32
    return %c0_i32, %c0_i32_0 : i32, i32
  }
  func.func @transform_9(%arg0: i32) -> (i32, i32) {
    %c0_i32 = arith.constant 0 : i32
    %c0_i32_0 = arith.constant 0 : i32
    %c0_i32_1 = arith.constant 0 : i32
    return %c0_i32, %c0_i32_0 : i32, i32
  }
  func.func @transform_10(%arg0: i32) -> (i32, i32) {
    %c0_i32 = arith.constant 0 : i32
    %c0_i32_0 = arith.constant 0 : i32
    %c0_i32_1 = arith.constant 0 : i32
    return %c0_i32, %c0_i32_0 : i32, i32
  }
  func.func @transform_11(%arg0: i32) -> (i32, i32) {
    %c0_i32 = arith.constant 0 : i32
    %c0_i32_0 = arith.constant 0 : i32
    %c0_i32_1 = arith.constant 0 : i32
    return %c0_i32, %c0_i32_0 : i32, i32
  }
  func.func @transform_12(%arg0: i32) -> (i32, i32) {
    %c0_i32 = arith.constant 0 : i32
    %c0_i32_0 = arith.constant 0 : i32
    %c0_i32_1 = arith.constant 0 : i32
    return %c0_i32, %c0_i32_0 : i32, i32
  }
  func.func @transform_13(%arg0: i32) -> (i32, i32) {
    %c0_i32 = arith.constant 0 : i32
    %c0_i32_0 = arith.constant 0 : i32
    return %arg0, %c0_i32 : i32, i32
  }
}

</mosaic_0001>

<llo_original>
// kernel: tpu_custom_call.1
$region0: #{tpu_custom_call.1}
  #allocation0 [shape = 'u32[]', space=smem, size = 0x4, offset = 0x4, fixed_abs, tag = 'smem constant byte address 0x4 - core index']
  #allocation1 [shape = 'u32[144,128]{1,0:T(1,128)}', space=vmem, size = 0x12000, scoped, tag = 'internal scratch']
  %s0 = inlined_call_operand.vmem [shape: f32[32,32], index: 0, kind: input, shape index: {}]
  %s1 = inlined_call_operand.vmem [shape: f32[1,32], index: 1, kind: input, shape index: {}]
  %s2 = inlined_call_operand.vmem [shape: f32[1,32], index: 2, kind: input, shape index: {}]
  %s3 = inlined_call_operand.vmem [shape: bf16[32,96], index: 3, kind: input, shape index: {}]
  %s4 = inlined_call_operand.vmem [shape: f32[1,96], index: 4, kind: input, shape index: {}]
  %s5 = inlined_call_operand.vmem [shape: bf16[32,32], index: 5, kind: input, shape index: {}]
  %s6 = inlined_call_operand.vmem [shape: f32[1,32], index: 6, kind: input, shape index: {}]
  %s7 = inlined_call_operand.vmem [shape: f32[1,32], index: 7, kind: input, shape index: {}]
  %s8 = inlined_call_operand.vmem [shape: f32[1,32], index: 8, kind: input, shape index: {}]
  %s9 = inlined_call_operand.vmem [shape: bf16[32,128], index: 9, kind: input, shape index: {}]
  %s10 = inlined_call_operand.vmem [shape: f32[1,128], index: 10, kind: input, shape index: {}]
  %s11 = inlined_call_operand.vmem [shape: bf16[128,32], index: 11, kind: input, shape index: {}]
  %s12 = inlined_call_operand.vmem [shape: f32[1,32], index: 12, kind: input, shape index: {}]
  %s13 = inlined_call_operand.hbm [shape: f32[32,32], index: 13, kind: output, shape index: {}]
  %s14 = sld [smem:[#allocation0]]
  $region85: #{tpu_custom_call.1} parent=0
    _
  %s16 = ssub.s32 1, %s14
  %s17 = scalar_select 0, %s16, %s14
  $region1: #{tpu_custom_call.1} parent=0
    #allocation2 [shape = 'u8[16384]{0}', space=vmem, size = 0x4000, scoped, tag = 'output window, operand 0']
    #allocation3 [shape = 's32[2]{0}', space=sflag, size = 0x8, scoped, tag = 'scoped memory for tpu_custom_call.1']
    %18 = vsyncpa [#allocation3], 0
    %s19 = scalar_lea.sflag [#allocation3], 1
    %20 = vsyncpa %s19, 0
    loop: start=0, step=1, limit=4
    $region2: #{tpu_custom_call.1} parent=1 // loop_pre_header
      _
    $region3: #{tpu_custom_call.1} parent=1 // loop_header
      %s22 = sphi 0, %s26
      %p23 = scmp.ge.s32.totalorder %s22, 4
      %s32 = sphi 0, %s34
      %s35 = sphi 0, %s32
      %s36 = sphi 0, %s35
      %s52 = sphi 0, %s36
      %s56 = sphi 0, %s56
      %s58 = sphi 0, %s56
      %s59 = sphi 0, %s58
      %s73 = sphi 0, %s59
      %s77 = sphi 0, %s77
      %s79 = sphi 0, %s77
      %s80 = sphi 0, %s79
      %s94 = sphi 0, %s80
      %s98 = sphi 0, %s98
      %s100 = sphi 0, %s98
      %s101 = sphi 0, %s100
      %s115 = sphi 0, %s101
      %s119 = sphi 0, %s119
      %s121 = sphi 0, %s119
      %s122 = sphi 0, %s121
      %s136 = sphi 0, %s122
      %s140 = sphi 0, %s140
      %s142 = sphi 0, %s140
      %s143 = sphi 0, %s142
      %s157 = sphi 0, %s143
      %s161 = sphi 0, %s161
      %s163 = sphi 0, %s161
      %s164 = sphi 0, %s163
      %s178 = sphi 0, %s164
      %s182 = sphi 0, %s182
      %s184 = sphi 0, %s182
      %s185 = sphi 0, %s184
      %s199 = sphi 0, %s185
      %s203 = sphi 0, %s203
      %s205 = sphi 0, %s203
      %s206 = sphi 0, %s205
      %s220 = sphi 0, %s206
      %s224 = sphi 0, %s224
      %s226 = sphi 0, %s224
      %s227 = sphi 0, %s226
      %s241 = sphi 0, %s227
      %s245 = sphi 0, %s245
      %s247 = sphi 0, %s245
      %s248 = sphi 0, %s247
      %s262 = sphi 0, %s248
      %s266 = sphi 0, %s266
      %s268 = sphi 0, %s266
      %s269 = sphi 0, %s268
      %s283 = sphi 0, %s269
      %s287 = sphi 0, %s287
      %s289 = sphi 0, %s287
      %s290 = sphi 0, %s289
      %s304 = sphi 0, %s290
      %s310 = sphi 0, %s312
      %s313 = sphi 0, %s310
      %s314 = sphi 0, %s313
      %s330 = sphi 0, %s314
    $region4: #{tpu_custom_call.1} parent=1 // loop_header_branch
      %25 = sbr.rel (%p23) target = $region8
    $region5: #{tpu_custom_call.1} parent=1 // loop_body
      %s27 = ssub.s32 %s22, 1
      %s28 = ssub.s32 %s22, 2
      %s29 = sadd.s32 %s22, 1
      %s30 = ssub.s32 %s22, %s29
      %p31 = scmp.eq.s32.totalorder %s30, 0
      %s33 = sadd.s32 %s32, 1
      %s34 = scalar_select %p31, %s32, %s33
      %p37 = pneg %p31
      %p38 = scmp.eq.s32.totalorder %s22, 1
      %p39 = por %p37, %p38
      %p40 = scmp.ne.s32.totalorder %s32, %s35
      %p41 = scmp.eq.s32.totalorder %s22, 0
      %p42 = por %p40, %p41
      %p43 = scmp.ne.s32.totalorder %s32, %s35
      %p44 = scmp.eq.s32.totalorder %s27, 1
      %p45 = por %p43, %p44
      %p46 = scmp.ne.s32.totalorder %s35, %s36
      %p47 = scmp.eq.s32.totalorder %s27, 0
      %p48 = por %p46, %p47
      %p49 = scmp.ne.s32.totalorder %s35, %s36
      %p50 = scmp.eq.s32.totalorder %s28, 1
      %p51 = por %p49, %p50
      %p53 = scmp.ne.s32.totalorder %s36, %s52
      %p54 = scmp.eq.s32.totalorder %s28, 0
      %p55 = por %p53, %p54
      %s57 = sadd.s32 %s56, 1
      %p60 = scmp.eq.s32.totalorder %s22, 1
      %p61 = scmp.ne.s32.totalorder %s56, %s58
      %p62 = scmp.eq.s32.totalorder %s22, 0
      %p63 = por %p61, %p62
      %p64 = scmp.ne.s32.totalorder %s56, %s58
      %p65 = scmp.eq.s32.totalorder %s27, 1
      %p66 = por %p64, %p65
      %p67 = scmp.ne.s32.totalorder %s58, %s59
      %p68 = scmp.eq.s32.totalorder %s27, 0
      %p69 = por %p67, %p68
      %p70 = scmp.ne.s32.totalorder %s58, %s59
      %p71 = scmp.eq.s32.totalorder %s28, 1
      %p72 = por %p70, %p71
      %p74 = scmp.ne.s32.totalorder %s59, %s73
      %p75 = scmp.eq.s32.totalorder %s28, 0
      %p76 = por %p74, %p75
      %s78 = sadd.s32 %s77, 1
      %p81 = scmp.eq.s32.totalorder %s22, 1
      %p82 = scmp.ne.s32.totalorder %s77, %s79
      %p83 = scmp.eq.s32.totalorder %s22, 0
      %p84 = por %p82, %p83
      %p85 = scmp.ne.s32.totalorder %s77, %s79
      %p86 = scmp.eq.s32.totalorder %s27, 1
      %p87 = por %p85, %p86
      %p88 = scmp.ne.s32.totalorder %s79, %s80
      %p89 = scmp.eq.s32.totalorder %s27, 0
      %p90 = por %p88, %p89
      %p91 = scmp.ne.s32.totalorder %s79, %s80
      %p92 = scmp.eq.s32.totalorder %s28, 1
      %p93 = por %p91, %p92
      %p95 = scmp.ne.s32.totalorder %s80, %s94
      %p96 = scmp.eq.s32.totalorder %s28, 0
      %p97 = por %p95, %p96
      %s99 = sadd.s32 %s98, 1
      %p102 = scmp.eq.s32.totalorder %s22, 1
      %p103 = scmp.ne.s32.totalorder %s98, %s100
      %p104 = scmp.eq.s32.totalorder %s22, 0
      %p105 = por %p103, %p104
      %p106 = scmp.ne.s32.totalorder %s98, %s100
      %p107 = scmp.eq.s32.totalorder %s27, 1
      %p108 = por %p106, %p107
      %p109 = scmp.ne.s32.totalorder %s100, %s101
      %p110 = scmp.eq.s32.totalorder %s27, 0
      %p111 = por %p109, %p110
      %p112 = scmp.ne.s32.totalorder %s100, %s101
      %p113 = scmp.eq.s32.totalorder %s28, 1
      %p114 = por %p112, %p113
      %p116 = scmp.ne.s32.totalorder %s101, %s115
      %p117 = scmp.eq.s32.totalorder %s28, 0
      %p118 = por %p116, %p117
      %s120 = sadd.s32 %s119, 1
      %p123 = scmp.eq.s32.totalorder %s22, 1
      %p124 = scmp.ne.s32.totalorder %s119, %s121
      %p125 = scmp.eq.s32.totalorder %s22, 0
      %p126 = por %p124, %p125
      %p127 = scmp.ne.s32.totalorder %s119, %s121
      %p128 = scmp.eq.s32.totalorder %s27, 1
      %p129 = por %p127, %p128
      %p130 = scmp.ne.s32.totalorder %s121, %s122
      %p131 = scmp.eq.s32.totalorder %s27, 0
      %p132 = por %p130, %p131
      %p133 = scmp.ne.s32.totalorder %s121, %s122
      %p134 = scmp.eq.s32.totalorder %s28, 1
      %p135 = por %p133, %p134
      %p137 = scmp.ne.s32.totalorder %s122, %s136
      %p138 = scmp.eq.s32.totalorder %s28, 0
      %p139 = por %p137, %p138
      %s141 = sadd.s32 %s140, 1
      %p144 = scmp.eq.s32.totalorder %s22, 1
      %p145 = scmp.ne.s32.totalorder %s140, %s142
      %p146 = scmp.eq.s32.totalorder %s22, 0
      %p147 = por %p145, %p146
      %p148 = scmp.ne.s32.totalorder %s140, %s142
      %p149 = scmp.eq.s32.totalorder %s27, 1
      %p150 = por %p148, %p149
      %p151 = scmp.ne.s32.totalorder %s142, %s143
      %p152 = scmp.eq.s32.totalorder %s27, 0
      %p153 = por %p151, %p152
      %p154 = scmp.ne.s32.totalorder %s142, %s143
      %p155 = scmp.eq.s32.totalorder %s28, 1
      %p156 = por %p154, %p155
      %p158 = scmp.ne.s32.totalorder %s143, %s157
      %p159 = scmp.eq.s32.totalorder %s28, 0
      %p160 = por %p158, %p159
      %s162 = sadd.s32 %s161, 1
      %p165 = scmp.eq.s32.totalorder %s22, 1
      %p166 = scmp.ne.s32.totalorder %s161, %s163
      %p167 = scmp.eq.s32.totalorder %s22, 0
      %p168 = por %p166, %p167
      %p169 = scmp.ne.s32.totalorder %s161, %s163
      %p170 = scmp.eq.s32.totalorder %s27, 1
      %p171 = por %p169, %p170
      %p172 = scmp.ne.s32.totalorder %s163, %s164
      %p173 = scmp.eq.s32.totalorder %s27, 0
      %p174 = por %p172, %p173
      %p175 = scmp.ne.s32.totalorder %s163, %s164
      %p176 = scmp.eq.s32.totalorder %s28, 1
      %p177 = por %p175, %p176
      %p179 = scmp.ne.s32.totalorder %s164, %s178
      %p180 = scmp.eq.s32.totalorder %s28, 0
      %p181 = por %p179, %p180
      %s183 = sadd.s32 %s182, 1
      %p186 = scmp.eq.s32.totalorder %s22, 1
      %p187 = scmp.ne.s32.totalorder %s182, %s184
      %p188 = scmp.eq.s32.totalorder %s22, 0
      %p189 = por %p187, %p188
      %p190 = scmp.ne.s32.totalorder %s182, %s184
      %p191 = scmp.eq.s32.totalorder %s27, 1
      %p192 = por %p190, %p191
      %p193 = scmp.ne.s32.totalorder %s184, %s185
      %p194 = scmp.eq.s32.totalorder %s27, 0
      %p195 = por %p193, %p194
      %p196 = scmp.ne.s32.totalorder %s184, %s185
      %p197 = scmp.eq.s32.totalorder %s28, 1
      %p198 = por %p196, %p197
      %p200 = scmp.ne.s32.totalorder %s185, %s199
      %p201 = scmp.eq.s32.totalorder %s28, 0
      %p202 = por %p200, %p201
      %s204 = sadd.s32 %s203, 1
      %p207 = scmp.eq.s32.totalorder %s22, 1
      %p208 = scmp.ne.s32.totalorder %s203, %s205
      %p209 = scmp.eq.s32.totalorder %s22, 0
      %p210 = por %p208, %p209
      %p211 = scmp.ne.s32.totalorder %s203, %s205
      %p212 = scmp.eq.s32.totalorder %s27, 1
      %p213 = por %p211, %p212
      %p214 = scmp.ne.s32.totalorder %s205, %s206
      %p215 = scmp.eq.s32.totalorder %s27, 0
      %p216 = por %p214, %p215
      %p217 = scmp.ne.s32.totalorder %s205, %s206
      %p218 = scmp.eq.s32.totalorder %s28, 1
      %p219 = por %p217, %p218
      %p221 = scmp.ne.s32.totalorder %s206, %s220
      %p222 = scmp.eq.s32.totalorder %s28, 0
      %p223 = por %p221, %p222
      %s225 = sadd.s32 %s224, 1
      %p228 = scmp.eq.s32.totalorder %s22, 1
      %p229 = scmp.ne.s32.totalorder %s224, %s226
      %p230 = scmp.eq.s32.totalorder %s22, 0
      %p231 = por %p229, %p230
      %p232 = scmp.ne.s32.totalorder %s224, %s226
      %p233 = scmp.eq.s32.totalorder %s27, 1
      %p234 = por %p232, %p233
      %p235 = scmp.ne.s32.totalorder %s226, %s227
      %p236 = scmp.eq.s32.totalorder %s27, 0
      %p237 = por %p235, %p236
      %p238 = scmp.ne.s32.totalorder %s226, %s227
      %p239 = scmp.eq.s32.totalorder %s28, 1
      %p240 = por %p238, %p239
      %p242 = scmp.ne.s32.totalorder %s227, %s241
      %p243 = scmp.eq.s32.totalorder %s28, 0
      %p244 = por %p242, %p243
      %s246 = sadd.s32 %s245, 1
      %p249 = scmp.eq.s32.totalorder %s22, 1
      %p250 = scmp.ne.s32.totalorder %s245, %s247
      %p251 = scmp.eq.s32.totalorder %s22, 0
      %p252 = por %p250, %p251
      %p253 = scmp.ne.s32.totalorder %s245, %s247
      %p254 = scmp.eq.s32.totalorder %s27, 1
      %p255 = por %p253, %p254
      %p256 = scmp.ne.s32.totalorder %s247, %s248
      %p257 = scmp.eq.s32.totalorder %s27, 0
      %p258 = por %p256, %p257
      %p259 = scmp.ne.s32.totalorder %s247, %s248
      %p260 = scmp.eq.s32.totalorder %s28, 1
      %p261 = por %p259, %p260
      %p263 = scmp.ne.s32.totalorder %s248, %s262
      %p264 = scmp.eq.s32.totalorder %s28, 0
      %p265 = por %p263, %p264
      %s267 = sadd.s32 %s266, 1
      %p270 = scmp.eq.s32.totalorder %s22, 1
      %p271 = scmp.ne.s32.totalorder %s266, %s268
      %p272 = scmp.eq.s32.totalorder %s22, 0
      %p273 = por %p271, %p272
      %p274 = scmp.ne.s32.totalorder %s266, %s268
      %p275 = scmp.eq.s32.totalorder %s27, 1
      %p276 = por %p274, %p275
      %p277 = scmp.ne.s32.totalorder %s268, %s269
      %p278 = scmp.eq.s32.totalorder %s27, 0
      %p279 = por %p277, %p278
      %p280 = scmp.ne.s32.totalorder %s268, %s269
      %p281 = scmp.eq.s32.totalorder %s28, 1
      %p282 = por %p280, %p281
      %p284 = scmp.ne.s32.totalorder %s269, %s283
      %p285 = scmp.eq.s32.totalorder %s28, 0
      %p286 = por %p284, %p285
      %s288 = sadd.s32 %s287, 1
      %p291 = scmp.eq.s32.totalorder %s22, 1
      %p292 = scmp.ne.s32.totalorder %s287, %s289
      %p293 = scmp.eq.s32.totalorder %s22, 0
      %p294 = por %p292, %p293
      %p295 = scmp.ne.s32.totalorder %s287, %s289
      %p296 = scmp.eq.s32.totalorder %s27, 1
      %p297 = por %p295, %p296
      %p298 = scmp.ne.s32.totalorder %s289, %s290
      %p299 = scmp.eq.s32.totalorder %s27, 0
      %p300 = por %p298, %p299
      %p301 = scmp.ne.s32.totalorder %s289, %s290
      %p302 = scmp.eq.s32.totalorder %s28, 1
      %p303 = por %p301, %p302
      %p305 = scmp.ne.s32.totalorder %s290, %s304
      %p306 = scmp.eq.s32.totalorder %s28, 0
      %p307 = por %p305, %p306
      %s308 = ssub.s32 %s22, %s29
      %p309 = scmp.eq.s32.totalorder %s308, 0
      %s311 = sadd.s32 %s310, 1
      %s312 = scalar_select %p309, %s310, %s311
      %p315 = pneg %p309
      %p316 = scmp.eq.s32.totalorder %s22, 1
      %p317 = por %p315, %p316
      %p318 = scmp.ne.s32.totalorder %s310, %s313
      %p319 = scmp.eq.s32.totalorder %s22, 0
      %p320 = por %p318, %p319
      %p321 = scmp.ne.s32.totalorder %s310, %s313
      %p322 = scmp.eq.s32.totalorder %s27, 1
      %p323 = por %p321, %p322
      %p324 = scmp.ne.s32.totalorder %s313, %s314
      %p325 = scmp.eq.s32.totalorder %s27, 0
      %p326 = por %p324, %p325
      %p327 = scmp.ne.s32.totalorder %s313, %s314
      %p328 = scmp.eq.s32.totalorder %s28, 1
      %p329 = por %p327, %p328
      %p331 = scmp.ne.s32.totalorder %s314, %s330
      %p332 = scmp.eq.s32.totalorder %s28, 0
      %p333 = por %p331, %p332
      %p334 = scmp.le.s32.totalorder 1, %s22
      %p335 = scmp.lt.s32.totalorder %s22, 3
      %p336 = pnand %p334, %p335
      %p337 = pneg %p336
      // Predicated region
      $region9: #{tpu_custom_call.1} parent=5 // pred_check
        _
      $region10: #{tpu_custom_call.1} parent=5 // pred_check_branch
        %339 = sbr.rel (%p336) target = $region12
      $region11: #{tpu_custom_call.1} parent=5 // pred_region
        %s340 = ssub.s32 %s22, 1
        // Predicated region
        $region13: #{tpu_custom_call.1} parent=11 // pred_check
          %p341 = pneg %p69
        $region14: #{tpu_custom_call.1} parent=11 // pred_check_branch
          %343 = sbr.rel (%p341) target = $region16
        $region15: #{tpu_custom_call.1} parent=11 // pred_region
          _
        $region16: #{tpu_custom_call.1} parent=11 // pred_fallthru
          _
        // Predicated region
        $region17: #{tpu_custom_call.1} parent=11 // pred_check
          %p344 = pneg %p90
        $region18: #{tpu_custom_call.1} parent=11 // pred_check_branch
          %346 = sbr.rel (%p344) target = $region20
        $region19: #{tpu_custom_call.1} parent=11 // pred_region
          _
        $region20: #{tpu_custom_call.1} parent=11 // pred_fallthru
          _
        // Predicated region
        $region21: #{tpu_custom_call.1} parent=11 // pred_check
          %p347 = pneg %p111
        $region22: #{tpu_custom_call.1} parent=11 // pred_check_branch
          %349 = sbr.rel (%p347) target = $region24
        $region23: #{tpu_custom_call.1} parent=11 // pred_region
          _
        $region24: #{tpu_custom_call.1} parent=11 // pred_fallthru
          _
        // Predicated region
        $region25: #{tpu_custom_call.1} parent=11 // pred_check
          %p350 = pneg %p132
        $region26: #{tpu_custom_call.1} parent=11 // pred_check_branch
          %352 = sbr.rel (%p350) target = $region28
        $region27: #{tpu_custom_call.1} parent=11 // pred_region
          _
        $region28: #{tpu_custom_call.1} parent=11 // pred_fallthru
          _
        // Predicated region
        $region29: #{tpu_custom_call.1} parent=11 // pred_check
          %p353 = pneg %p153
        $region30: #{tpu_custom_call.1} parent=11 // pred_check_branch
          %355 = sbr.rel (%p353) target = $region32
        $region31: #{tpu_custom_call.1} parent=11 // pred_region
          _
        $region32: #{tpu_custom_call.1} parent=11 // pred_fallthru
          _
        // Predicated region
        $region33: #{tpu_custom_call.1} parent=11 // pred_check
          %p356 = pneg %p174
        $region34: #{tpu_custom_call.1} parent=11 // pred_check_branch
          %358 = sbr.rel (%p356) target = $region36
        $region35: #{tpu_custom_call.1} parent=11 // pred_region
          _
        $region36: #{tpu_custom_call.1} parent=11 // pred_fallthru
          _
        // Predicated region
        $region37: #{tpu_custom_call.1} parent=11 // pred_check
          %p359 = pneg %p195
        $region38: #{tpu_custom_call.1} parent=11 // pred_check_branch
          %361 = sbr.rel (%p359) target = $region40
        $region39: #{tpu_custom_call.1} parent=11 // pred_region
          _
        $region40: #{tpu_custom_call.1} parent=11 // pred_fallthru
          _
        // Predicated region
        $region41: #{tpu_custom_call.1} parent=11 // pred_check
          %p362 = pneg %p216
        $region42: #{tpu_custom_call.1} parent=11 // pred_check_branch
          %364 = sbr.rel (%p362) target = $region44
        $region43: #{tpu_custom_call.1} parent=11 // pred_region
          _
        $region44: #{tpu_custom_call.1} parent=11 // pred_fallthru
          _
        // Predicated region
        $region45: #{tpu_custom_call.1} parent=11 // pred_check
          %p365 = pneg %p237
        $region46: #{tpu_custom_call.1} parent=11 // pred_check_branch
          %367 = sbr.rel (%p365) target = $region48
        $region47: #{tpu_custom_call.1} parent=11 // pred_region
          _
        $region48: #{tpu_custom_call.1} parent=11 // pred_fallthru
          _
        // Predicated region
        $region49: #{tpu_custom_call.1} parent=11 // pred_check
          %p368 = pneg %p258
        $region50: #{tpu_custom_call.1} parent=11 // pred_check_branch
          %370 = sbr.rel (%p368) target = $region52
        $region51: #{tpu_custom_call.1} parent=11 // pred_region
          _
        $region52: #{tpu_custom_call.1} parent=11 // pred_fallthru
          _
        // Predicated region
        $region53: #{tpu_custom_call.1} parent=11 // pred_check
          %p371 = pneg %p279
        $region54: #{tpu_custom_call.1} parent=11 // pred_check_branch
          %373 = sbr.rel (%p371) target = $region56
        $region55: #{tpu_custom_call.1} parent=11 // pred_region
          _
        $region56: #{tpu_custom_call.1} parent=11 // pred_fallthru
          _
        // Predicated region
        $region57: #{tpu_custom_call.1} parent=11 // pred_check
          %p374 = pneg %p300
        $region58: #{tpu_custom_call.1} parent=11 // pred_check_branch
          %376 = sbr.rel (%p374) target = $region60
        $region59: #{tpu_custom_call.1} parent=11 // pred_region
          _
        $region60: #{tpu_custom_call.1} parent=11 // pred_fallthru
          _
      $region12: #{tpu_custom_call.1} parent=5 // pred_fallthru
        _
      %p377 = scmp.lt.s32.totalorder %s22, 2
      // Predicated region
      $region61: #{tpu_custom_call.1} parent=5 // pred_check
        %p378 = pneg %p377
      $region62: #{tpu_custom_call.1} parent=5 // pred_check_branch
        %380 = sbr.rel (%p378) target = $region64
      $region63: #{tpu_custom_call.1} parent=5 // pred_region
        // Predicated region
        $region65: #{tpu_custom_call.1} parent=63 // pred_check
          %p381 = pneg %p42
        $region66: #{tpu_custom_call.1} parent=63 // pred_check_branch
          %383 = sbr.rel (%p381) target = $region68
        $region67: #{tpu_custom_call.1} parent=63 // pred_region
          %s384 = smul.u32 2, %s22
          %p385 = scmp.lt.s32.totalorder %s384, 3
          %s386 = scalar_select %p385, %s384, 3
          %s387 = smul.addr %s386, 8
          %s388 = scalar_lea.vmem %s0, %s387
          %s389 = smul.u32 2, %s22
        $region68: #{tpu_custom_call.1} parent=63 // pred_fallthru
          _
      $region64: #{tpu_custom_call.1} parent=5 // pred_fallthru
        _
      %p390 = scmp.le.s32.totalorder 1, %s22
      %p391 = scmp.lt.s32.totalorder %s22, 3
      %p392 = pnand %p390, %p391
      %p393 = pneg %p392
      // Predicated region
      $region69: #{tpu_custom_call.1} parent=5 // pred_check
        _
      $region70: #{tpu_custom_call.1} parent=5 // pred_check_branch
        %395 = sbr.rel (%p392) target = $region72
      $region71: #{tpu_custom_call.1} parent=5 // pred_region
        %s396 = ssub.s32 %s22, 1
        %s397 = smul.u32 2, %s27
        %p398 = scmp.lt.s32.totalorder %s397, 3
        %s399 = scalar_select %p398, %s397, 3
        %s400 = smul.addr %s399, 8
        %s401 = scalar_lea.vmem %s0, %s400
        %p402 = pneg %p48
        %p403 = pneg %p45
        %p404 = pneg %p69
        %p405 = pneg %p66
        %p406 = pneg %p90
        %p407 = pneg %p87
        %p408 = pneg %p111
        %p409 = pneg %p108
        %p410 = pneg %p132
        %p411 = pneg %p129
        %p412 = pneg %p153
        %p413 = pneg %p150
        %p414 = pneg %p174
        %p415 = pneg %p171
        %p416 = pneg %p195
        %p417 = pneg %p192
        %p418 = pneg %p216
        %p419 = pneg %p213
        %p420 = pneg %p237
        %p421 = pneg %p234
        %p422 = pneg %p258
        %p423 = pneg %p255
        %p424 = pneg %p279
        %p425 = pneg %p276
        %p426 = pneg %p300
        %p427 = pneg %p297
        %p428 = pneg %p326
        %p429 = pneg %p323
        %s430 = sand.u32 %s313, 1
        %s431 = scalar_lea.sflag [#allocation3], %s430
        %s432 = sand.u32 %s313, 1
        %s433 = smul.addr %s432, 16
        %s434 = scalar_lea.vmem [#allocation2], %s433
        %s435 = smul.u32 2, %s27
        %p436 = scmp.lt.s32.totalorder %s435, 3
        %s437 = scalar_select %p436, %s435, 3
        %s438 = smul.addr %s437, 8
        %s439 = scalar_lea.vmem %s0, %s438
        %s440 = smul.u32 2, %s27
        %s441 = smul.u32 2, %s27
        %v443 = vld [vmem:[%s439] sm:$0xff]
        %v444 = vld [vmem:[%s439 + $0x8] sm:$0xff]
        %v445 = vld [vmem:[%s1] sm:$0x1]
        %v446 = vld [vmem:[%s2] sm:$0x1]
        %vm447 = vcmask 261120
        %v448 = vsel %vm447, %v443, 0.0
        %449 = vadd.xlane.f32.xlu0 %v448
        %v450 = vpop.xlane.xlu0 %449
        %v451 = vsel %vm447, %v444, 0.0
        %452 = vadd.xlane.f32.xlu0 %v451
        %v453 = vpop.xlane.xlu0 %452
        %v454 = vrcp.pop 32.0
        %v455 = vmul.f32 %v450, %v454
        %v456 = vmul.f32 %v453, %v454
        %v457 = vsub.f32 %v443, %v455
        %v458 = vsub.f32 %v444, %v456
        %v459 = vmul.f32 %v457, %v457
        %v460 = vmul.f32 %v458, %v458
        %v461 = vsel %vm447, %v459, 0.0
        %462 = vadd.xlane.f32.xlu0 %v461
        %v463 = vpop.xlane.xlu0 %462
        %v464 = vsel %vm447, %v460, 0.0
        %465 = vadd.xlane.f32.xlu0 %v464
        %v466 = vpop.xlane.xlu0 %465
        %v467 = vmul.f32 %v463, %v454
        %v468 = vmul.f32 %v466, %v454
        %v469 = vadd.f32 %v467, 1e-05
        %v470 = vadd.f32 %v468, 1e-05
        %v471 = vrsqrt.pop %v469
        %v472 = vrsqrt.pop %v470
        %v473 = vmul.f32 %v457, %v471
        %v474 = vmul.f32 %v458, %v472
        %v476 = vlaneseq
        %v477 = vshrl.u32 %v476, 7
        %v478 = vsub.s32 0, %v477
        %v479 = vrot.slane %v445, %v478
        %v481 = vmul.f32 %v473, %v479
        %v482 = vmul.f32 %v474, %v479
        %v484 = vlaneseq
        %v485 = vshrl.u32 %v484, 7
        %v486 = vsub.s32 0, %v485
        %v487 = vrot.slane %v446, %v486
        %v489 = vadd.f32 %v481, %v487
        %v490 = vadd.f32 %v482, %v487
        %v491 = vld [vmem:[%s3] sm:$0xf]
        %v492 = vld [vmem:[%s3 + $0x4] sm:$0xf]
        %v493 = vld [vmem:[%s3 + $0x8] sm:$0xf]
        %v494 = vld [vmem:[%s3 + $0xc] sm:$0xf]
        %v495 = vpack.c.bf16 %v490, %v489
        %v496 = vld [vmem:[%s4] sm:$0x1]
        %v498 = vlaneseq
        %v499 = vshrl.u32 %v498, 7
        %v500 = vsub.s32 0, %v499
        %v501 = vrot.slane %v496, %v500
        %v507 = vunpack.c.l.b16 %v491
        %v508 = vunpack.c.l.b16 %v492
        %v509 = vunpack.c.l.b16 %v493
        %v510 = vunpack.c.l.b16 %v494
        %v511 = vpack.c.b16 %v508, %v507
        %v512 = vpack.c.b16 %v510, %v509
        %v516 = vsel %vm447, %v495, 0
        %518 = vmatprep.subr.bf16.mxu0 0
        %519 = vmatpush1.bf16.msra.mxu0 %v511
        %520 = vmatprep.subr.bf16.mxu0 0
        %521 = vmatpush1.bf16.msra.mxu0 %v512
        %522 = vmatprep.subr.bf16.mxu0 0
        %523 = vmatpush1.bf16.msra.mxu0 0
        %524 = vmatprep.subr.bf16.mxu0 0
        %525 = vmatpush1.bf16.msra.mxu0 0
        %526 = vmatprep.subr.bf16.mxu0 0
        %527 = vmatpush1.bf16.msra.mxu0 0
        %528 = vmatprep.subr.bf16.mxu0 0
        %529 = vmatpush1.bf16.msra.mxu0 0
        %530 = vmatprep.subr.bf16.mxu0 0
        %531 = vmatpush1.bf16.msra.mxu0 0
        %532 = vmatprep.subr.bf16.mxu0 0
        %533 = vmatpush1.bf16.msra.mxu0 0
        %534 = vmatprep.subr.bf16.mxu0 0
        %535 = vmatpush1.bf16.msra.mxu0 0
        %536 = vmatprep.subr.bf16.mxu0 0
        %537 = vmatpush1.bf16.msra.mxu0 0
        %538 = vmatprep.subr.bf16.mxu0 0
        %539 = vmatpush1.bf16.msra.mxu0 0
        %540 = vmatprep.subr.bf16.mxu0 0
        %541 = vmatpush1.bf16.msra.mxu0 0
        %542 = vmatprep.subr.bf16.mxu0 0
        %543 = vmatpush1.bf16.msra.mxu0 0
        %544 = vmatprep.subr.bf16.mxu0 0
        %545 = vmatpush1.bf16.msra.mxu0 0
        %546 = vmatprep.subr.bf16.mxu0 0
        %547 = vmatpush1.bf16.msra.mxu0 0
        %548 = vmatprep.subr.bf16.mxu0 0
        %549 = vmatpush1.bf16.msra.mxu0 0
        %550 = vmatprep.mubr.bf16.mxu0 0
        %551 = vmatmul.mubr.bf16.gmra.mrb[0].mxu0 %v516
        %v552 = vpop.f32.mrb[0].mxu0
        %v553 = vadd.f32 %v501, %v552
        %v554 = vpop.f32.mrb[0].mxu0
        %v555 = vpop.f32.mrb[0].mxu0
        %v556 = vadd.f32 %v501, %v555
        %v557 = vpop.f32.mrb[0].mxu0
        %558 = vdwg.mxu0
        %561 = vrot.lane.b32.xlu0 %v553, 120
        %v562 = vpop.permute.xlu0 %561
        %563 = vrot.lane.b32.xlu0 %v556, 120
        %v564 = vpop.permute.xlu0 %563
        %567 = vrot.lane.b32.xlu0 %v553, 112
        %v568 = vpop.permute.xlu0 %567
        %569 = vrot.lane.b32.xlu0 %v556, 112
        %v570 = vpop.permute.xlu0 %569
        %573 = vrot.lane.b32.xlu0 %v553, 104
        %v574 = vpop.permute.xlu0 %573
        %575 = vrot.lane.b32.xlu0 %v556, 104
        %v576 = vpop.permute.xlu0 %575
        %v579 = vpack.c.bf16 %v553, %v553
        %v580 = vpack.c.bf16 %v556, %v556
        %v581 = vpack.c.bf16 %v562, %v562
        %v582 = vpack.c.bf16 %v564, %v564
        %v583 = vpack.c.bf16 %v568, %v568
        %v584 = vpack.c.bf16 %v570, %v570
        %v585 = vpack.c.bf16 %v574, %v574
        %v586 = vpack.c.bf16 %v576, %v576
        %v587 = vlaneseq
        %v588 = vshrl.u32 %v587, 7
        %v589 = vlaneseq
        %v590 = vand.u32 %v589, 127
        %vm591 = vcmp.ge.s32.totalorder %v588, %v590
        %593 = vrot.lane.b32.xlu0 %v579, 96
        %v594 = vpop.permute.xlu0 %593
        %vm595 = vcmask 64512
        %v597 = vsel %vm595, %v579, 0
        %v600 = vsel %vm595, %v594, 0
        %602 = vmatprep.subr.bf16.mxu0 0
        %603 = vmatpush1.bf16.xpose.msra.mxu0 %v600
        %604 = vmatprep.subr.bf16.mxu0 0
        %605 = vmatpush1.bf16.xpose.msra.mxu0 0
        %606 = vmatprep.subr.bf16.mxu0 0
        %607 = vmatpush1.bf16.xpose.msra.mxu0 0
        %608 = vmatprep.subr.bf16.mxu0 0
        %609 = vmatpush1.bf16.xpose.msra.mxu0 0
        %610 = vmatprep.subr.bf16.mxu0 0
        %611 = vmatpush1.bf16.xpose.msra.mxu0 0
        %612 = vmatprep.subr.bf16.mxu0 0
        %613 = vmatpush1.bf16.xpose.msra.mxu0 0
        %614 = vmatprep.subr.bf16.mxu0 0
        %615 = vmatpush1.bf16.xpose.msra.mxu0 0
        %616 = vmatprep.subr.bf16.mxu0 0
        %617 = vmatpush1.bf16.xpose.msra.mxu0 0
        %618 = vmatprep.subr.bf16.mxu0 0
        %619 = vmatpush1.bf16.xpose.msra.mxu0 0
        %620 = vmatprep.subr.bf16.mxu0 0
        %621 = vmatpush1.bf16.xpose.msra.mxu0 0
        %622 = vmatprep.subr.bf16.mxu0 0
        %623 = vmatpush1.bf16.xpose.msra.mxu0 0
        %624 = vmatprep.subr.bf16.mxu0 0
        %625 = vmatpush1.bf16.xpose.msra.mxu0 0
        %626 = vmatprep.subr.bf16.mxu0 0
        %627 = vmatpush1.bf16.xpose.msra.mxu0 0
        %628 = vmatprep.subr.bf16.mxu0 0
        %629 = vmatpush1.bf16.xpose.msra.mxu0 0
        %630 = vmatprep.subr.bf16.mxu0 0
        %631 = vmatpush1.bf16.xpose.msra.mxu0 0
        %632 = vmatprep.subr.bf16.mxu0 0
        %633 = vmatpush1.bf16.xpose.msra.mxu0 0
        %634 = vmatprep.mubr.bf16.mxu0 0
        %635 = vmatmul.mubr.bf16.gmra.mrb[0].mxu0 %v597
        %v636 = vpop.f32.mrb[0].mxu0
        %v637 = vadd.f32 0.0, %v636
        %v638 = vpop.f32.mrb[0].mxu0
        %v639 = vpop.f32.mrb[0].mxu0
        %v640 = vpop.f32.mrb[0].mxu0
        %641 = vdwg.mxu0
        %643 = vrot.lane.b32.xlu0 %v580, 96
        %v644 = vpop.permute.xlu0 %643
        %v646 = vsel %vm595, %v580, 0
        %v649 = vsel %vm595, %v644, 0
        %651 = vmatprep.subr.bf16.mxu0 0
        %652 = vmatpush1.bf16.xpose.msra.mxu0 %v649
        %653 = vmatprep.subr.bf16.mxu0 0
        %654 = vmatpush1.bf16.xpose.msra.mxu0 0
        %655 = vmatprep.subr.bf16.mxu0 0
        %656 = vmatpush1.bf16.xpose.msra.mxu0 0
        %657 = vmatprep.subr.bf16.mxu0 0
        %658 = vmatpush1.bf16.xpose.msra.mxu0 0
        %659 = vmatprep.subr.bf16.mxu0 0
        %660 = vmatpush1.bf16.xpose.msra.mxu0 0
        %661 = vmatprep.subr.bf16.mxu0 0
        %662 = vmatpush1.bf16.xpose.msra.mxu0 0
        %663 = vmatprep.subr.bf16.mxu0 0
        %664 = vmatpush1.bf16.xpose.msra.mxu0 0
        %665 = vmatprep.subr.bf16.mxu0 0
        %666 = vmatpush1.bf16.xpose.msra.mxu0 0
        %667 = vmatprep.subr.bf16.mxu0 0
        %668 = vmatpush1.bf16.xpose.msra.mxu0 0
        %669 = vmatprep.subr.bf16.mxu0 0
        %670 = vmatpush1.bf16.xpose.msra.mxu0 0
        %671 = vmatprep.subr.bf16.mxu0 0
        %672 = vmatpush1.bf16.xpose.msra.mxu0 0
        %673 = vmatprep.subr.bf16.mxu0 0
        %674 = vmatpush1.bf16.xpose.msra.mxu0 0
        %675 = vmatprep.subr.bf16.mxu0 0
        %676 = vmatpush1.bf16.xpose.msra.mxu0 0
        %677 = vmatprep.subr.bf16.mxu0 0
        %678 = vmatpush1.bf16.xpose.msra.mxu0 0
        %679 = vmatprep.subr.bf16.mxu0 0
        %680 = vmatpush1.bf16.xpose.msra.mxu0 0
        %681 = vmatprep.subr.bf16.mxu0 0
        %682 = vmatpush1.bf16.xpose.msra.mxu0 0
        %683 = vmatprep.mubr.bf16.mxu0 0
        %684 = vmatmul.mubr.bf16.gmra.mrb[0].mxu0 %v646
        %v685 = vpop.f32.mrb[0].mxu0
        %v686 = vadd.f32 0.0, %v685
        %v687 = vpop.f32.mrb[0].mxu0
        %v688 = vpop.f32.mrb[0].mxu0
        %v689 = vpop.f32.mrb[0].mxu0
        %690 = vdwg.mxu0
        %692 = vrot.lane.b32.xlu0 %v581, 96
        %v693 = vpop.permute.xlu0 %692
        %v695 = vsel %vm595, %v581, 0
        %v698 = vsel %vm595, %v693, 0
        %700 = vmatprep.subr.bf16.mxu0 0
        %701 = vmatpush1.bf16.xpose.msra.mxu0 %v698
        %702 = vmatprep.subr.bf16.mxu0 0
        %703 = vmatpush1.bf16.xpose.msra.mxu0 0
        %704 = vmatprep.subr.bf16.mxu0 0
        %705 = vmatpush1.bf16.xpose.msra.mxu0 0
        %706 = vmatprep.subr.bf16.mxu0 0
        %707 = vmatpush1.bf16.xpose.msra.mxu0 0
        %708 = vmatprep.subr.bf16.mxu0 0
        %709 = vmatpush1.bf16.xpose.msra.mxu0 0
        %710 = vmatprep.subr.bf16.mxu0 0
        %711 = vmatpush1.bf16.xpose.msra.mxu0 0
        %712 = vmatprep.subr.bf16.mxu0 0
        %713 = vmatpush1.bf16.xpose.msra.mxu0 0
        %714 = vmatprep.subr.bf16.mxu0 0
        %715 = vmatpush1.bf16.xpose.msra.mxu0 0
        %716 = vmatprep.subr.bf16.mxu0 0
        %717 = vmatpush1.bf16.xpose.msra.mxu0 0
        %718 = vmatprep.subr.bf16.mxu0 0
        %719 = vmatpush1.bf16.xpose.msra.mxu0 0
        %720 = vmatprep.subr.bf16.mxu0 0
        %721 = vmatpush1.bf16.xpose.msra.mxu0 0
        %722 = vmatprep.subr.bf16.mxu0 0
        %723 = vmatpush1.bf16.xpose.msra.mxu0 0
        %724 = vmatprep.subr.bf16.mxu0 0
        %725 = vmatpush1.bf16.xpose.msra.mxu0 0
        %726 = vmatprep.subr.bf16.mxu0 0
        %727 = vmatpush1.bf16.xpose.msra.mxu0 0
        %728 = vmatprep.subr.bf16.mxu0 0
        %729 = vmatpush1.bf16.xpose.msra.mxu0 0
        %730 = vmatprep.subr.bf16.mxu0 0
        %731 = vmatpush1.bf16.xpose.msra.mxu0 0
        %732 = vmatprep.mubr.bf16.mxu0 0
        %733 = vmatmul.mubr.bf16.gmra.mrb[0].mxu0 %v695
        %v734 = vpop.f32.mrb[0].mxu0
        %v735 = vadd.f32 0.0, %v734
        %v736 = vpop.f32.mrb[0].mxu0
        %v737 = vpop.f32.mrb[0].mxu0
        %v738 = vpop.f32.mrb[0].mxu0
        %739 = vdwg.mxu0
        %741 = vrot.lane.b32.xlu0 %v582, 96
        %v742 = vpop.permute.xlu0 %741
        %v744 = vsel %vm595, %v582, 0
        %v747 = vsel %vm595, %v742, 0
        %749 = vmatprep.subr.bf16.mxu0 0
        %750 = vmatpush1.bf16.xpose.msra.mxu0 %v747
        %751 = vmatprep.subr.bf16.mxu0 0
        %752 = vmatpush1.bf16.xpose.msra.mxu0 0
        %753 = vmatprep.subr.bf16.mxu0 0
        %754 = vmatpush1.bf16.xpose.msra.mxu0 0
        %755 = vmatprep.subr.bf16.mxu0 0
        %756 = vmatpush1.bf16.xpose.msra.mxu0 0
        %757 = vmatprep.subr.bf16.mxu0 0
        %758 = vmatpush1.bf16.xpose.msra.mxu0 0
        %759 = vmatprep.subr.bf16.mxu0 0
        %760 = vmatpush1.bf16.xpose.msra.mxu0 0
        %761 = vmatprep.subr.bf16.mxu0 0
        %762 = vmatpush1.bf16.xpose.msra.mxu0 0
        %763 = vmatprep.subr.bf16.mxu0 0
        %764 = vmatpush1.bf16.xpose.msra.mxu0 0
        %765 = vmatprep.subr.bf16.mxu0 0
        %766 = vmatpush1.bf16.xpose.msra.mxu0 0
        %767 = vmatprep.subr.bf16.mxu0 0
        %768 = vmatpush1.bf16.xpose.msra.mxu0 0
        %769 = vmatprep.subr.bf16.mxu0 0
        %770 = vmatpush1.bf16.xpose.msra.mxu0 0
        %771 = vmatprep.subr.bf16.mxu0 0
        %772 = vmatpush1.bf16.xpose.msra.mxu0 0
        %773 = vmatprep.subr.bf16.mxu0 0
        %774 = vmatpush1.bf16.xpose.msra.mxu0 0
        %775 = vmatprep.subr.bf16.mxu0 0
        %776 = vmatpush1.bf16.xpose.msra.mxu0 0
        %777 = vmatprep.subr.bf16.mxu0 0
        %778 = vmatpush1.bf16.xpose.msra.mxu0 0
        %779 = vmatprep.subr.bf16.mxu0 0
        %780 = vmatpush1.bf16.xpose.msra.mxu0 0
        %781 = vmatprep.mubr.bf16.mxu0 0
        %782 = vmatmul.mubr.bf16.gmra.mrb[0].mxu0 %v744
        %v783 = vpop.f32.mrb[0].mxu0
        %v784 = vadd.f32 0.0, %v783
        %v785 = vpop.f32.mrb[0].mxu0
        %v786 = vpop.f32.mrb[0].mxu0
        %v787 = vpop.f32.mrb[0].mxu0
        %788 = vdwg.mxu0
        %790 = vrot.lane.b32.xlu0 %v583, 96
        %v791 = vpop.permute.xlu0 %790
        %v793 = vsel %vm595, %v583, 0
        %v796 = vsel %vm595, %v791, 0
        %798 = vmatprep.subr.bf16.mxu0 0
        %799 = vmatpush1.bf16.xpose.msra.mxu0 %v796
        %800 = vmatprep.subr.bf16.mxu0 0
        %801 = vmatpush1.bf16.xpose.msra.mxu0 0
        %802 = vmatprep.subr.bf16.mxu0 0
        %803 = vmatpush1.bf16.xpose.msra.mxu0 0
        %804 = vmatprep.subr.bf16.mxu0 0
        %805 = vmatpush1.bf16.xpose.msra.mxu0 0
        %806 = vmatprep.subr.bf16.mxu0 0
        %807 = vmatpush1.bf16.xpose.msra.mxu0 0
        %808 = vmatprep.subr.bf16.mxu0 0
        %809 = vmatpush1.bf16.xpose.msra.mxu0 0
        %810 = vmatprep.subr.bf16.mxu0 0
        %811 = vmatpush1.bf16.xpose.msra.mxu0 0
        %812 = vmatprep.subr.bf16.mxu0 0
        %813 = vmatpush1.bf16.xpose.msra.mxu0 0
        %814 = vmatprep.subr.bf16.mxu0 0
        %815 = vmatpush1.bf16.xpose.msra.mxu0 0
        %816 = vmatprep.subr.bf16.mxu0 0
        %817 = vmatpush1.bf16.xpose.msra.mxu0 0
        %818 = vmatprep.subr.bf16.mxu0 0
        %819 = vmatpush1.bf16.xpose.msra.mxu0 0
        %820 = vmatprep.subr.bf16.mxu0 0
        %821 = vmatpush1.bf16.xpose.msra.mxu0 0
        %822 = vmatprep.subr.bf16.mxu0 0
        %823 = vmatpush1.bf16.xpose.msra.mxu0 0
        %824 = vmatprep.subr.bf16.mxu0 0
        %825 = vmatpush1.bf16.xpose.msra.mxu0 0
        %826 = vmatprep.subr.bf16.mxu0 0
        %827 = vmatpush1.bf16.xpose.msra.mxu0 0
        %828 = vmatprep.subr.bf16.mxu0 0
        %829 = vmatpush1.bf16.xpose.msra.mxu0 0
        %830 = vmatprep.mubr.bf16.mxu0 0
        %831 = vmatmul.mubr.bf16.gmra.mrb[0].mxu0 %v793
        %v832 = vpop.f32.mrb[0].mxu0
        %v833 = vadd.f32 0.0, %v832
        %v834 = vpop.f32.mrb[0].mxu0
        %v835 = vpop.f32.mrb[0].mxu0
        %v836 = vpop.f32.mrb[0].mxu0
        %837 = vdwg.mxu0
        %839 = vrot.lane.b32.xlu0 %v584, 96
        %v840 = vpop.permute.xlu0 %839
        %v842 = vsel %vm595, %v584, 0
        %v845 = vsel %vm595, %v840, 0
        %847 = vmatprep.subr.bf16.mxu0 0
        %848 = vmatpush1.bf16.xpose.msra.mxu0 %v845
        %849 = vmatprep.subr.bf16.mxu0 0
        %850 = vmatpush1.bf16.xpose.msra.mxu0 0
        %851 = vmatprep.subr.bf16.mxu0 0
        %852 = vmatpush1.bf16.xpose.msra.mxu0 0
        %853 = vmatprep.subr.bf16.mxu0 0
        %854 = vmatpush1.bf16.xpose.msra.mxu0 0
        %855 = vmatprep.subr.bf16.mxu0 0
        %856 = vmatpush1.bf16.xpose.msra.mxu0 0
        %857 = vmatprep.subr.bf16.mxu0 0
        %858 = vmatpush1.bf16.xpose.msra.mxu0 0
        %859 = vmatprep.subr.bf16.mxu0 0
        %860 = vmatpush1.bf16.xpose.msra.mxu0 0
        %861 = vmatprep.subr.bf16.mxu0 0
        %862 = vmatpush1.bf16.xpose.msra.mxu0 0
        %863 = vmatprep.subr.bf16.mxu0 0
        %864 = vmatpush1.bf16.xpose.msra.mxu0 0
        %865 = vmatprep.subr.bf16.mxu0 0
        %866 = vmatpush1.bf16.xpose.msra.mxu0 0
        %867 = vmatprep.subr.bf16.mxu0 0
        %868 = vmatpush1.bf16.xpose.msra.mxu0 0
        %869 = vmatprep.subr.bf16.mxu0 0
        %870 = vmatpush1.bf16.xpose.msra.mxu0 0
        %871 = vmatprep.subr.bf16.mxu0 0
        %872 = vmatpush1.bf16.xpose.msra.mxu0 0
        %873 = vmatprep.subr.bf16.mxu0 0
        %874 = vmatpush1.bf16.xpose.msra.mxu0 0
        %875 = vmatprep.subr.bf16.mxu0 0
        %876 = vmatpush1.bf16.xpose.msra.mxu0 0
        %877 = vmatprep.subr.bf16.mxu0 0
        %878 = vmatpush1.bf16.xpose.msra.mxu0 0
        %879 = vmatprep.mubr.bf16.mxu0 0
        %880 = vmatmul.mubr.bf16.gmra.mrb[0].mxu0 %v842
        %v881 = vpop.f32.mrb[0].mxu0
        %v882 = vadd.f32 0.0, %v881
        %v883 = vpop.f32.mrb[0].mxu0
        %v884 = vpop.f32.mrb[0].mxu0
        %v885 = vpop.f32.mrb[0].mxu0
        %886 = vdwg.mxu0
        %888 = vrot.lane.b32.xlu0 %v585, 96
        %v889 = vpop.permute.xlu0 %888
        %v891 = vsel %vm595, %v585, 0
        %v894 = vsel %vm595, %v889, 0
        %896 = vmatprep.subr.bf16.mxu0 0
        %897 = vmatpush1.bf16.xpose.msra.mxu0 %v894
        %898 = vmatprep.subr.bf16.mxu0 0
        %899 = vmatpush1.bf16.xpose.msra.mxu0 0
        %900 = vmatprep.subr.bf16.mxu0 0
        %901 = vmatpush1.bf16.xpose.msra.mxu0 0
        %902 = vmatprep.subr.bf16.mxu0 0
        %903 = vmatpush1.bf16.xpose.msra.mxu0 0
        %904 = vmatprep.subr.bf16.mxu0 0
        %905 = vmatpush1.bf16.xpose.msra.mxu0 0
        %906 = vmatprep.subr.bf16.mxu0 0
        %907 = vmatpush1.bf16.xpose.msra.mxu0 0
        %908 = vmatprep.subr.bf16.mxu0 0
        %909 = vmatpush1.bf16.xpose.msra.mxu0 0
        %910 = vmatprep.subr.bf16.mxu0 0
        %911 = vmatpush1.bf16.xpose.msra.mxu0 0
        %912 = vmatprep.subr.bf16.mxu0 0
        %913 = vmatpush1.bf16.xpose.msra.mxu0 0
        %914 = vmatprep.subr.bf16.mxu0 0
        %915 = vmatpush1.bf16.xpose.msra.mxu0 0
        %916 = vmatprep.subr.bf16.mxu0 0
        %917 = vmatpush1.bf16.xpose.msra.mxu0 0
        %918 = vmatprep.subr.bf16.mxu0 0
        %919 = vmatpush1.bf16.xpose.msra.mxu0 0
        %920 = vmatprep.subr.bf16.mxu0 0
        %921 = vmatpush1.bf16.xpose.msra.mxu0 0
        %922 = vmatprep.subr.bf16.mxu0 0
        %923 = vmatpush1.bf16.xpose.msra.mxu0 0
        %924 = vmatprep.subr.bf16.mxu0 0
        %925 = vmatpush1.bf16.xpose.msra.mxu0 0
        %926 = vmatprep.subr.bf16.mxu0 0
        %927 = vmatpush1.bf16.xpose.msra.mxu0 0
        %928 = vmatprep.mubr.bf16.mxu0 0
        %929 = vmatmul.mubr.bf16.gmra.mrb[0].mxu0 %v891
        %v930 = vpop.f32.mrb[0].mxu0
        %v931 = vadd.f32 0.0, %v930
        %v932 = vpop.f32.mrb[0].mxu0
        %v933 = vpop.f32.mrb[0].mxu0
        %v934 = vpop.f32.mrb[0].mxu0
        %935 = vdwg.mxu0
        %937 = vrot.lane.b32.xlu0 %v586, 96
        %v938 = vpop.permute.xlu0 %937
        %v940 = vsel %vm595, %v586, 0
        %v943 = vsel %vm595, %v938, 0
        %945 = vmatprep.subr.bf16.mxu0 0
        %946 = vmatpush1.bf16.xpose.msra.mxu0 %v943
        %947 = vmatprep.subr.bf16.mxu0 0
        %948 = vmatpush1.bf16.xpose.msra.mxu0 0
        %949 = vmatprep.subr.bf16.mxu0 0
        %950 = vmatpush1.bf16.xpose.msra.mxu0 0
        %951 = vmatprep.subr.bf16.mxu0 0
        %952 = vmatpush1.bf16.xpose.msra.mxu0 0
        %953 = vmatprep.subr.bf16.mxu0 0
        %954 = vmatpush1.bf16.xpose.msra.mxu0 0
        %955 = vmatprep.subr.bf16.mxu0 0
        %956 = vmatpush1.bf16.xpose.msra.mxu0 0
        %957 = vmatprep.subr.bf16.mxu0 0
        %958 = vmatpush1.bf16.xpose.msra.mxu0 0
        %959 = vmatprep.subr.bf16.mxu0 0
        %960 = vmatpush1.bf16.xpose.msra.mxu0 0
        %961 = vmatprep.subr.bf16.mxu0 0
        %962 = vmatpush1.bf16.xpose.msra.mxu0 0
        %963 = vmatprep.subr.bf16.mxu0 0
        %964 = vmatpush1.bf16.xpose.msra.mxu0 0
        %965 = vmatprep.subr.bf16.mxu0 0
        %966 = vmatpush1.bf16.xpose.msra.mxu0 0
        %967 = vmatprep.subr.bf16.mxu0 0
        %968 = vmatpush1.bf16.xpose.msra.mxu0 0
        %969 = vmatprep.subr.bf16.mxu0 0
        %970 = vmatpush1.bf16.xpose.msra.mxu0 0
        %971 = vmatprep.subr.bf16.mxu0 0
        %972 = vmatpush1.bf16.xpose.msra.mxu0 0
        %973 = vmatprep.subr.bf16.mxu0 0
        %974 = vmatpush1.bf16.xpose.msra.mxu0 0
        %975 = vmatprep.subr.bf16.mxu0 0
        %976 = vmatpush1.bf16.xpose.msra.mxu0 0
        %977 = vmatprep.mubr.bf16.mxu0 0
        %978 = vmatmul.mubr.bf16.gmra.mrb[0].mxu0 %v940
        %v979 = vpop.f32.mrb[0].mxu0
        %v980 = vadd.f32 0.0, %v979
        %v981 = vpop.f32.mrb[0].mxu0
        %v982 = vpop.f32.mrb[0].mxu0
        %v983 = vpop.f32.mrb[0].mxu0
        %984 = vdwg.mxu0
        %v985 = vsel %vm591, 1, 0
        %vm986 = vcmp.eq.s32.totalorder %v985, 1
        %v987 = vsel %vm986, %v637, -inf
        %v988 = vsel %vm986, %v686, -inf
        %v989 = vsel %vm986, %v735, -inf
        %v990 = vsel %vm986, %v784, -inf
        %v991 = vsel %vm986, %v833, -inf
        %v992 = vsel %vm986, %v882, -inf
        %v993 = vsel %vm986, %v931, -inf
        %v994 = vsel %vm986, %v980, -inf
        %v995 = vsel %vm595, %v987, -inf
        %996 = vmax.xlane.f32.xlu0 %v995
        %v997 = vpop.xlane.xlu0 %996
        %v998 = vsel %vm595, %v988, -inf
        %999 = vmax.xlane.f32.xlu0 %v998
        %v1000 = vpop.xlane.xlu0 %999
        %v1001 = vsel %vm595, %v989, -inf
        %1002 = vmax.xlane.f32.xlu0 %v1001
        %v1003 = vpop.xlane.xlu0 %1002
        %v1004 = vsel %vm595, %v990, -inf
        %1005 = vmax.xlane.f32.xlu0 %v1004
        %v1006 = vpop.xlane.xlu0 %1005
        %v1007 = vsel %vm595, %v991, -inf
        %1008 = vmax.xlane.f32.xlu0 %v1007
        %v1009 = vpop.xlane.xlu0 %1008
        %v1010 = vsel %vm595, %v992, -inf
        %1011 = vmax.xlane.f32.xlu0 %v1010
        %v1012 = vpop.xlane.xlu0 %1011
        %v1013 = vsel %vm595, %v993, -inf
        %1014 = vmax.xlane.f32.xlu0 %v1013
        %v1015 = vpop.xlane.xlu0 %1014
        %v1016 = vsel %vm595, %v994, -inf
        %1017 = vmax.xlane.f32.xlu0 %v1016
        %v1018 = vpop.xlane.xlu0 %1017
        %v1019 = vsub.f32 %v987, %v997
        %v1020 = vsub.f32 %v988, %v1000
        %v1021 = vsub.f32 %v989, %v1003
        %v1022 = vsub.f32 %v990, %v1006
        %v1023 = vsub.f32 %v991, %v1009
        %v1024 = vsub.f32 %v992, %v1012
        %v1025 = vsub.f32 %v993, %v1015
        %v1026 = vsub.f32 %v994, %v1018
        %v1027 = vmul.f32 %v1019, 1.442695
        %v1028 = vpow.pop %v1027
        %v1029 = vmul.f32 %v1020, 1.442695
        %v1030 = vpow.pop %v1029
        %v1031 = vmul.f32 %v1021, 1.442695
        %v1032 = vpow.pop %v1031
        %v1033 = vmul.f32 %v1022, 1.442695
        %v1034 = vpow.pop %v1033
        %v1035 = vmul.f32 %v1023, 1.442695
        %v1036 = vpow.pop %v1035
        %v1037 = vmul.f32 %v1024, 1.442695
        %v1038 = vpow.pop %v1037
        %v1039 = vmul.f32 %v1025, 1.442695
        %v1040 = vpow.pop %v1039
        %v1041 = vmul.f32 %v1026, 1.442695
        %v1042 = vpow.pop %v1041
        %v1043 = vsel %vm595, %v1028, 0.0
        %1044 = vadd.xlane.f32.xlu0 %v1043
        %v1045 = vpop.xlane.xlu0 %1044
        %v1046 = vsel %vm595, %v1030, 0.0
        %1047 = vadd.xlane.f32.xlu0 %v1046
        %v1048 = vpop.xlane.xlu0 %1047
        %v1049 = vsel %vm595, %v1032, 0.0
        %1050 = vadd.xlane.f32.xlu0 %v1049
        %v1051 = vpop.xlane.xlu0 %1050
        %v1052 = vsel %vm595, %v1034, 0.0
        %1053 = vadd.xlane.f32.xlu0 %v1052
        %v1054 = vpop.xlane.xlu0 %1053
        %v1055 = vsel %vm595, %v1036, 0.0
        %1056 = vadd.xlane.f32.xlu0 %v1055
        %v1057 = vpop.xlane.xlu0 %1056
        %v1058 = vsel %vm595, %v1038, 0.0
        %1059 = vadd.xlane.f32.xlu0 %v1058
        %v1060 = vpop.xlane.xlu0 %1059
        %v1061 = vsel %vm595, %v1040, 0.0
        %1062 = vadd.xlane.f32.xlu0 %v1061
        %v1063 = vpop.xlane.xlu0 %1062
        %v1064 = vsel %vm595, %v1042, 0.0
        %1065 = vadd.xlane.f32.xlu0 %v1064
        %v1066 = vpop.xlane.xlu0 %1065
        %v1067 = vrcp.pop %v1045
        %v1068 = vrcp.pop %v1048
        %v1069 = vrcp.pop %v1051
        %v1070 = vrcp.pop %v1054
        %v1071 = vrcp.pop %v1057
        %v1072 = vrcp.pop %v1060
        %v1073 = vrcp.pop %v1063
        %v1074 = vrcp.pop %v1066
        %v1075 = vmul.f32 %v1028, %v1067
        %v1076 = vmul.f32 %v1030, %v1068
        %v1077 = vmul.f32 %v1032, %v1069
        %v1078 = vmul.f32 %v1034, %v1070
        %v1079 = vmul.f32 %v1036, %v1071
        %v1080 = vmul.f32 %v1038, %v1072
        %v1081 = vmul.f32 %v1040, %v1073
        %v1082 = vmul.f32 %v1042, %v1074
        %v1083 = vpack.c.bf16 %v1075, %v1075
        %v1084 = vpack.c.bf16 %v1076, %v1076
        %v1085 = vpack.c.bf16 %v1077, %v1077
        %v1086 = vpack.c.bf16 %v1078, %v1078
        %v1087 = vpack.c.bf16 %v1079, %v1079
        %v1088 = vpack.c.bf16 %v1080, %v1080
        %v1089 = vpack.c.bf16 %v1081, %v1081
        %v1090 = vpack.c.bf16 %v1082, %v1082
        %1091 = vrot.lane.b32.xlu0 %v579, 64
        %v1092 = vpop.permute.xlu0 %1091
        %v1094 = vsel %vm595, %v1083, 0
        %vm1096 = vcmask 1043456
        %v1098 = vsel %vm1096, %v1092, 0
        %1100 = vmatprep.subr.bf16.mxu0 0
        %1101 = vmatpush1.bf16.msra.mxu0 %v1098
        %1102 = vmatprep.subr.bf16.mxu0 0
        %1103 = vmatpush1.bf16.msra.mxu0 0
        %1104 = vmatprep.subr.bf16.mxu0 0
        %1105 = vmatpush1.bf16.msra.mxu0 0
        %1106 = vmatprep.subr.bf16.mxu0 0
        %1107 = vmatpush1.bf16.msra.mxu0 0
        %1108 = vmatprep.subr.bf16.mxu0 0
        %1109 = vmatpush1.bf16.msra.mxu0 0
        %1110 = vmatprep.subr.bf16.mxu0 0
        %1111 = vmatpush1.bf16.msra.mxu0 0
        %1112 = vmatprep.subr.bf16.mxu0 0
        %1113 = vmatpush1.bf16.msra.mxu0 0
        %1114 = vmatprep.subr.bf16.mxu0 0
        %1115 = vmatpush1.bf16.msra.mxu0 0
        %1116 = vmatprep.subr.bf16.mxu0 0
        %1117 = vmatpush1.bf16.msra.mxu0 0
        %1118 = vmatprep.subr.bf16.mxu0 0
        %1119 = vmatpush1.bf16.msra.mxu0 0
        %1120 = vmatprep.subr.bf16.mxu0 0
        %1121 = vmatpush1.bf16.msra.mxu0 0
        %1122 = vmatprep.subr.bf16.mxu0 0
        %1123 = vmatpush1.bf16.msra.mxu0 0
        %1124 = vmatprep.subr.bf16.mxu0 0
        %1125 = vmatpush1.bf16.msra.mxu0 0
        %1126 = vmatprep.subr.bf16.mxu0 0
        %1127 = vmatpush1.bf16.msra.mxu0 0
        %1128 = vmatprep.subr.bf16.mxu0 0
        %1129 = vmatpush1.bf16.msra.mxu0 0
        %1130 = vmatprep.subr.bf16.mxu0 0
        %1131 = vmatpush1.bf16.msra.mxu0 0
        %1132 = vmatprep.mubr.bf16.mxu0 0
        %1133 = vmatmul.mubr.bf16.gmra.mrb[0].mxu0 %v1094
        %v1134 = vpop.f32.mrb[0].mxu0
        %v1135 = vadd.f32 0.0, %v1134
        %v1136 = vpop.f32.mrb[0].mxu0
        %v1137 = vpop.f32.mrb[0].mxu0
        %v1138 = vpop.f32.mrb[0].mxu0
        %1139 = vdwg.mxu0
        %1140 = vrot.lane.b32.xlu0 %v580, 64
        %v1141 = vpop.permute.xlu0 %1140
        %v1143 = vsel %vm595, %v1084, 0
        %v1146 = vsel %vm1096, %v1141, 0
        %1148 = vmatprep.subr.bf16.mxu0 0
        %1149 = vmatpush1.bf16.msra.mxu0 %v1146
        %1150 = vmatprep.subr.bf16.mxu0 0
        %1151 = vmatpush1.bf16.msra.mxu0 0
        %1152 = vmatprep.subr.bf16.mxu0 0
        %1153 = vmatpush1.bf16.msra.mxu0 0
        %1154 = vmatprep.subr.bf16.mxu0 0
        %1155 = vmatpush1.bf16.msra.mxu0 0
        %1156 = vmatprep.subr.bf16.mxu0 0
        %1157 = vmatpush1.bf16.msra.mxu0 0
        %1158 = vmatprep.subr.bf16.mxu0 0
        %1159 = vmatpush1.bf16.msra.mxu0 0
        %1160 = vmatprep.subr.bf16.mxu0 0
        %1161 = vmatpush1.bf16.msra.mxu0 0
        %1162 = vmatprep.subr.bf16.mxu0 0
        %1163 = vmatpush1.bf16.msra.mxu0 0
        %1164 = vmatprep.subr.bf16.mxu0 0
        %1165 = vmatpush1.bf16.msra.mxu0 0
        %1166 = vmatprep.subr.bf16.mxu0 0
        %1167 = vmatpush1.bf16.msra.mxu0 0
        %1168 = vmatprep.subr.bf16.mxu0 0
        %1169 = vmatpush1.bf16.msra.mxu0 0
        %1170 = vmatprep.subr.bf16.mxu0 0
        %1171 = vmatpush1.bf16.msra.mxu0 0
        %1172 = vmatprep.subr.bf16.mxu0 0
        %1173 = vmatpush1.bf16.msra.mxu0 0
        %1174 = vmatprep.subr.bf16.mxu0 0
        %1175 = vmatpush1.bf16.msra.mxu0 0
        %1176 = vmatprep.subr.bf16.mxu0 0
        %1177 = vmatpush1.bf16.msra.mxu0 0
        %1178 = vmatprep.subr.bf16.mxu0 0
        %1179 = vmatpush1.bf16.msra.mxu0 0
        %1180 = vmatprep.mubr.bf16.mxu0 0
        %1181 = vmatmul.mubr.bf16.gmra.mrb[0].mxu0 %v1143
        %v1182 = vpop.f32.mrb[0].mxu0
        %v1183 = vadd.f32 0.0, %v1182
        %v1184 = vpop.f32.mrb[0].mxu0
        %v1185 = vpop.f32.mrb[0].mxu0
        %v1186 = vpop.f32.mrb[0].mxu0
        %1187 = vdwg.mxu0
        %1188 = vrot.lane.b32.xlu0 %v581, 64
        %v1189 = vpop.permute.xlu0 %1188
        %v1191 = vsel %vm595, %v1085, 0
        %v1194 = vsel %vm1096, %v1189, 0
        %1196 = vmatprep.subr.bf16.mxu0 0
        %1197 = vmatpush1.bf16.msra.mxu0 %v1194
        %1198 = vmatprep.subr.bf16.mxu0 0
        %1199 = vmatpush1.bf16.msra.mxu0 0
        %1200 = vmatprep.subr.bf16.mxu0 0
        %1201 = vmatpush1.bf16.msra.mxu0 0
        %1202 = vmatprep.subr.bf16.mxu0 0
        %1203 = vmatpush1.bf16.msra.mxu0 0
        %1204 = vmatprep.subr.bf16.mxu0 0
        %1205 = vmatpush1.bf16.msra.mxu0 0
        %1206 = vmatprep.subr.bf16.mxu0 0
        %1207 = vmatpush1.bf16.msra.mxu0 0
        %1208 = vmatprep.subr.bf16.mxu0 0
        %1209 = vmatpush1.bf16.msra.mxu0 0
        %1210 = vmatprep.subr.bf16.mxu0 0
        %1211 = vmatpush1.bf16.msra.mxu0 0
        %1212 = vmatprep.subr.bf16.mxu0 0
        %1213 = vmatpush1.bf16.msra.mxu0 0
        %1214 = vmatprep.subr.bf16.mxu0 0
        %1215 = vmatpush1.bf16.msra.mxu0 0
        %1216 = vmatprep.subr.bf16.mxu0 0
        %1217 = vmatpush1.bf16.msra.mxu0 0
        %1218 = vmatprep.subr.bf16.mxu0 0
        %1219 = vmatpush1.bf16.msra.mxu0 0
        %1220 = vmatprep.subr.bf16.mxu0 0
        %1221 = vmatpush1.bf16.msra.mxu0 0
        %1222 = vmatprep.subr.bf16.mxu0 0
        %1223 = vmatpush1.bf16.msra.mxu0 0
        %1224 = vmatprep.subr.bf16.mxu0 0
        %1225 = vmatpush1.bf16.msra.mxu0 0
        %1226 = vmatprep.subr.bf16.mxu0 0
        %1227 = vmatpush1.bf16.msra.mxu0 0
        %1228 = vmatprep.mubr.bf16.mxu0 0
        %1229 = vmatmul.mubr.bf16.gmra.mrb[0].mxu0 %v1191
        %v1230 = vpop.f32.mrb[0].mxu0
        %v1231 = vadd.f32 0.0, %v1230
        %v1232 = vpop.f32.mrb[0].mxu0
        %v1233 = vpop.f32.mrb[0].mxu0
        %v1234 = vpop.f32.mrb[0].mxu0
        %1235 = vdwg.mxu0
        %1236 = vrot.lane.b32.xlu0 %v582, 64
        %v1237 = vpop.permute.xlu0 %1236
        %v1239 = vsel %vm595, %v1086, 0
        %v1242 = vsel %vm1096, %v1237, 0
        %1244 = vmatprep.subr.bf16.mxu0 0
        %1245 = vmatpush1.bf16.msra.mxu0 %v1242
        %1246 = vmatprep.subr.bf16.mxu0 0
        %1247 = vmatpush1.bf16.msra.mxu0 0
        %1248 = vmatprep.subr.bf16.mxu0 0
        %1249 = vmatpush1.bf16.msra.mxu0 0
        %1250 = vmatprep.subr.bf16.mxu0 0
        %1251 = vmatpush1.bf16.msra.mxu0 0
        %1252 = vmatprep.subr.bf16.mxu0 0
        %1253 = vmatpush1.bf16.msra.mxu0 0
        %1254 = vmatprep.subr.bf16.mxu0 0
        %1255 = vmatpush1.bf16.msra.mxu0 0
        %1256 = vmatprep.subr.bf16.mxu0 0
        %1257 = vmatpush1.bf16.msra.mxu0 0
        %1258 = vmatprep.subr.bf16.mxu0 0
        %1259 = vmatpush1.bf16.msra.mxu0 0
        %1260 = vmatprep.subr.bf16.mxu0 0
        %1261 = vmatpush1.bf16.msra.mxu0 0
        %1262 = vmatprep.subr.bf16.mxu0 0
        %1263 = vmatpush1.bf16.msra.mxu0 0
        %1264 = vmatprep.subr.bf16.mxu0 0
        %1265 = vmatpush1.bf16.msra.mxu0 0
        %1266 = vmatprep.subr.bf16.mxu0 0
        %1267 = vmatpush1.bf16.msra.mxu0 0
        %1268 = vmatprep.subr.bf16.mxu0 0
        %1269 = vmatpush1.bf16.msra.mxu0 0
        %1270 = vmatprep.subr.bf16.mxu0 0
        %1271 = vmatpush1.bf16.msra.mxu0 0
        %1272 = vmatprep.subr.bf16.mxu0 0
        %1273 = vmatpush1.bf16.msra.mxu0 0
        %1274 = vmatprep.subr.bf16.mxu0 0
        %1275 = vmatpush1.bf16.msra.mxu0 0
        %1276 = vmatprep.mubr.bf16.mxu0 0
        %1277 = vmatmul.mubr.bf16.gmra.mrb[0].mxu0 %v1239
        %v1278 = vpop.f32.mrb[0].mxu0
        %v1279 = vadd.f32 0.0, %v1278
        %v1280 = vpop.f32.mrb[0].mxu0
        %v1281 = vpop.f32.mrb[0].mxu0
        %v1282 = vpop.f32.mrb[0].mxu0
        %1283 = vdwg.mxu0
        %1284 = vrot.lane.b32.xlu0 %v583, 64
        %v1285 = vpop.permute.xlu0 %1284
        %v1287 = vsel %vm595, %v1087, 0
        %v1290 = vsel %vm1096, %v1285, 0
        %1292 = vmatprep.subr.bf16.mxu0 0
        %1293 = vmatpush1.bf16.msra.mxu0 %v1290
        %1294 = vmatprep.subr.bf16.mxu0 0
        %1295 = vmatpush1.bf16.msra.mxu0 0
        %1296 = vmatprep.subr.bf16.mxu0 0
        %1297 = vmatpush1.bf16.msra.mxu0 0
        %1298 = vmatprep.subr.bf16.mxu0 0
        %1299 = vmatpush1.bf16.msra.mxu0 0
        %1300 = vmatprep.subr.bf16.mxu0 0
        %1301 = vmatpush1.bf16.msra.mxu0 0
        %1302 = vmatprep.subr.bf16.mxu0 0
        %1303 = vmatpush1.bf16.msra.mxu0 0
        %1304 = vmatprep.subr.bf16.mxu0 0
        %1305 = vmatpush1.bf16.msra.mxu0 0
        %1306 = vmatprep.subr.bf16.mxu0 0
        %1307 = vmatpush1.bf16.msra.mxu0 0
        %1308 = vmatprep.subr.bf16.mxu0 0
        %1309 = vmatpush1.bf16.msra.mxu0 0
        %1310 = vmatprep.subr.bf16.mxu0 0
        %1311 = vmatpush1.bf16.msra.mxu0 0
        %1312 = vmatprep.subr.bf16.mxu0 0
        %1313 = vmatpush1.bf16.msra.mxu0 0
        %1314 = vmatprep.subr.bf16.mxu0 0
        %1315 = vmatpush1.bf16.msra.mxu0 0
        %1316 = vmatprep.subr.bf16.mxu0 0
        %1317 = vmatpush1.bf16.msra.mxu0 0
        %1318 = vmatprep.subr.bf16.mxu0 0
        %1319 = vmatpush1.bf16.msra.mxu0 0
        %1320 = vmatprep.subr.bf16.mxu0 0
        %1321 = vmatpush1.bf16.msra.mxu0 0
        %1322 = vmatprep.subr.bf16.mxu0 0
        %1323 = vmatpush1.bf16.msra.mxu0 0
        %1324 = vmatprep.mubr.bf16.mxu0 0
        %1325 = vmatmul.mubr.bf16.gmra.mrb[0].mxu0 %v1287
        %v1326 = vpop.f32.mrb[0].mxu0
        %v1327 = vadd.f32 0.0, %v1326
        %v1328 = vpop.f32.mrb[0].mxu0
        %v1329 = vpop.f32.mrb[0].mxu0
        %v1330 = vpop.f32.mrb[0].mxu0
        %1331 = vdwg.mxu0
        %1332 = vrot.lane.b32.xlu0 %v584, 64
        %v1333 = vpop.permute.xlu0 %1332
        %v1335 = vsel %vm595, %v1088, 0
        %v1338 = vsel %vm1096, %v1333, 0
        %1340 = vmatprep.subr.bf16.mxu0 0
        %1341 = vmatpush1.bf16.msra.mxu0 %v1338
        %1342 = vmatprep.subr.bf16.mxu0 0
        %1343 = vmatpush1.bf16.msra.mxu0 0
        %1344 = vmatprep.subr.bf16.mxu0 0
        %1345 = vmatpush1.bf16.msra.mxu0 0
        %1346 = vmatprep.subr.bf16.mxu0 0
        %1347 = vmatpush1.bf16.msra.mxu0 0
        %1348 = vmatprep.subr.bf16.mxu0 0
        %1349 = vmatpush1.bf16.msra.mxu0 0
        %1350 = vmatprep.subr.bf16.mxu0 0
        %1351 = vmatpush1.bf16.msra.mxu0 0
        %1352 = vmatprep.subr.bf16.mxu0 0
        %1353 = vmatpush1.bf16.msra.mxu0 0
        %1354 = vmatprep.subr.bf16.mxu0 0
        %1355 = vmatpush1.bf16.msra.mxu0 0
        %1356 = vmatprep.subr.bf16.mxu0 0
        %1357 = vmatpush1.bf16.msra.mxu0 0
        %1358 = vmatprep.subr.bf16.mxu0 0
        %1359 = vmatpush1.bf16.msra.mxu0 0
        %1360 = vmatprep.subr.bf16.mxu0 0
        %1361 = vmatpush1.bf16.msra.mxu0 0
        %1362 = vmatprep.subr.bf16.mxu0 0
        %1363 = vmatpush1.bf16.msra.mxu0 0
        %1364 = vmatprep.subr.bf16.mxu0 0
        %1365 = vmatpush1.bf16.msra.mxu0 0
        %1366 = vmatprep.subr.bf16.mxu0 0
        %1367 = vmatpush1.bf16.msra.mxu0 0
        %1368 = vmatprep.subr.bf16.mxu0 0
        %1369 = vmatpush1.bf16.msra.mxu0 0
        %1370 = vmatprep.subr.bf16.mxu0 0
        %1371 = vmatpush1.bf16.msra.mxu0 0
        %1372 = vmatprep.mubr.bf16.mxu0 0
        %1373 = vmatmul.mubr.bf16.gmra.mrb[0].mxu0 %v1335
        %v1374 = vpop.f32.mrb[0].mxu0
        %v1375 = vadd.f32 0.0, %v1374
        %v1376 = vpop.f32.mrb[0].mxu0
        %v1377 = vpop.f32.mrb[0].mxu0
        %v1378 = vpop.f32.mrb[0].mxu0
        %1379 = vdwg.mxu0
        %1380 = vrot.lane.b32.xlu0 %v585, 64
        %v1381 = vpop.permute.xlu0 %1380
        %v1383 = vsel %vm595, %v1089, 0
        %v1386 = vsel %vm1096, %v1381, 0
        %1388 = vmatprep.subr.bf16.mxu0 0
        %1389 = vmatpush1.bf16.msra.mxu0 %v1386
        %1390 = vmatprep.subr.bf16.mxu0 0
        %1391 = vmatpush1.bf16.msra.mxu0 0
        %1392 = vmatprep.subr.bf16.mxu0 0
        %1393 = vmatpush1.bf16.msra.mxu0 0
        %1394 = vmatprep.subr.bf16.mxu0 0
        %1395 = vmatpush1.bf16.msra.mxu0 0
        %1396 = vmatprep.subr.bf16.mxu0 0
        %1397 = vmatpush1.bf16.msra.mxu0 0
        %1398 = vmatprep.subr.bf16.mxu0 0
        %1399 = vmatpush1.bf16.msra.mxu0 0
        %1400 = vmatprep.subr.bf16.mxu0 0
        %1401 = vmatpush1.bf16.msra.mxu0 0
        %1402 = vmatprep.subr.bf16.mxu0 0
        %1403 = vmatpush1.bf16.msra.mxu0 0
        %1404 = vmatprep.subr.bf16.mxu0 0
        %1405 = vmatpush1.bf16.msra.mxu0 0
        %1406 = vmatprep.subr.bf16.mxu0 0
        %1407 = vmatpush1.bf16.msra.mxu0 0
        %1408 = vmatprep.subr.bf16.mxu0 0
        %1409 = vmatpush1.bf16.msra.mxu0 0
        %1410 = vmatprep.subr.bf16.mxu0 0
        %1411 = vmatpush1.bf16.msra.mxu0 0
        %1412 = vmatprep.subr.bf16.mxu0 0
        %1413 = vmatpush1.bf16.msra.mxu0 0
        %1414 = vmatprep.subr.bf16.mxu0 0
        %1415 = vmatpush1.bf16.msra.mxu0 0
        %1416 = vmatprep.subr.bf16.mxu0 0
        %1417 = vmatpush1.bf16.msra.mxu0 0
        %1418 = vmatprep.subr.bf16.mxu0 0
        %1419 = vmatpush1.bf16.msra.mxu0 0
        %1420 = vmatprep.mubr.bf16.mxu0 0
        %1421 = vmatmul.mubr.bf16.gmra.mrb[0].mxu0 %v1383
        %v1422 = vpop.f32.mrb[0].mxu0
        %v1423 = vadd.f32 0.0, %v1422
        %v1424 = vpop.f32.mrb[0].mxu0
        %v1425 = vpop.f32.mrb[0].mxu0
        %v1426 = vpop.f32.mrb[0].mxu0
        %1427 = vdwg.mxu0
        %1428 = vrot.lane.b32.xlu0 %v586, 64
        %v1429 = vpop.permute.xlu0 %1428
        %v1431 = vsel %vm595, %v1090, 0
        %v1434 = vsel %vm1096, %v1429, 0
        %1436 = vmatprep.subr.bf16.mxu0 0
        %1437 = vmatpush1.bf16.msra.mxu0 %v1434
        %1438 = vmatprep.subr.bf16.mxu0 0
        %1439 = vmatpush1.bf16.msra.mxu0 0
        %1440 = vmatprep.subr.bf16.mxu0 0
        %1441 = vmatpush1.bf16.msra.mxu0 0
        %1442 = vmatprep.subr.bf16.mxu0 0
        %1443 = vmatpush1.bf16.msra.mxu0 0
        %1444 = vmatprep.subr.bf16.mxu0 0
        %1445 = vmatpush1.bf16.msra.mxu0 0
        %1446 = vmatprep.subr.bf16.mxu0 0
        %1447 = vmatpush1.bf16.msra.mxu0 0
        %1448 = vmatprep.subr.bf16.mxu0 0
        %1449 = vmatpush1.bf16.msra.mxu0 0
        %1450 = vmatprep.subr.bf16.mxu0 0
        %1451 = vmatpush1.bf16.msra.mxu0 0
        %1452 = vmatprep.subr.bf16.mxu0 0
        %1453 = vmatpush1.bf16.msra.mxu0 0
        %1454 = vmatprep.subr.bf16.mxu0 0
        %1455 = vmatpush1.bf16.msra.mxu0 0
        %1456 = vmatprep.subr.bf16.mxu0 0
        %1457 = vmatpush1.bf16.msra.mxu0 0
        %1458 = vmatprep.subr.bf16.mxu0 0
        %1459 = vmatpush1.bf16.msra.mxu0 0
        %1460 = vmatprep.subr.bf16.mxu0 0
        %1461 = vmatpush1.bf16.msra.mxu0 0
        %1462 = vmatprep.subr.bf16.mxu0 0
        %1463 = vmatpush1.bf16.msra.mxu0 0
        %1464 = vmatprep.subr.bf16.mxu0 0
        %1465 = vmatpush1.bf16.msra.mxu0 0
        %1466 = vmatprep.subr.bf16.mxu0 0
        %1467 = vmatpush1.bf16.msra.mxu0 0
        %1468 = vmatprep.mubr.bf16.mxu0 0
        %1469 = vmatmul.mubr.bf16.gmra.mrb[0].mxu0 %v1431
        %v1470 = vpop.f32.mrb[0].mxu0
        %v1471 = vadd.f32 0.0, %v1470
        %v1472 = vpop.f32.mrb[0].mxu0
        %v1473 = vpop.f32.mrb[0].mxu0
        %v1474 = vpop.f32.mrb[0].mxu0
        %1475 = vdwg.mxu0
        %1478 = vrot.lane.b32.xlu0 %v1231, 8
        %v1479 = vpop.permute.xlu0 %1478
        %1480 = vrot.lane.b32.xlu0 %v1279, 8
        %v1481 = vpop.permute.xlu0 %1480
        %1486 = vrot.lane.b32.xlu0 %v1327, 16
        %v1487 = vpop.permute.xlu0 %1486
        %1488 = vrot.lane.b32.xlu0 %v1375, 16
        %v1489 = vpop.permute.xlu0 %1488
        %1494 = vrot.lane.b32.xlu0 %v1423, 24
        %v1495 = vpop.permute.xlu0 %1494
        %1496 = vrot.lane.b32.xlu0 %v1471, 24
        %v1497 = vpop.permute.xlu0 %1496
        %v1500 = vsel %vm595, %v1135, %v1479
        %v1501 = vsel %vm595, %v1183, %v1481
        %vm1502 = vcmask 130048
        %v1503 = vsel %vm1502, %v1500, %v1487
        %v1504 = vsel %vm1502, %v1501, %v1489
        %vm1505 = vcmask 195584
        %v1506 = vsel %vm1505, %v1503, %v1495
        %v1507 = vsel %vm1505, %v1504, %v1497
        %v1508 = vld [vmem:[%s5] sm:$0xf]
        %v1509 = vld [vmem:[%s5 + $0x4] sm:$0xf]
        %v1510 = vld [vmem:[%s5 + $0x8] sm:$0xf]
        %v1511 = vld [vmem:[%s5 + $0xc] sm:$0xf]
        %v1512 = vpack.c.bf16 %v1507, %v1506
        %v1517 = vunpack.c.l.b16 %v1508
        %v1518 = vunpack.c.l.b16 %v1509
        %v1519 = vunpack.c.l.b16 %v1510
        %v1520 = vunpack.c.l.b16 %v1511
        %v1521 = vpack.c.b16 %v1518, %v1517
        %v1522 = vpack.c.b16 %v1520, %v1519
        %v1526 = vsel %vm447, %v1512, 0
        %1528 = vmatprep.subr.bf16.mxu0 0
        %1529 = vmatpush1.bf16.msra.mxu0 %v1521
        %1530 = vmatprep.subr.bf16.mxu0 0
        %1531 = vmatpush1.bf16.msra.mxu0 %v1522
        %1532 = vmatprep.subr.bf16.mxu0 0
        %1533 = vmatpush1.bf16.msra.mxu0 0
        %1534 = vmatprep.subr.bf16.mxu0 0
        %1535 = vmatpush1.bf16.msra.mxu0 0
        %1536 = vmatprep.subr.bf16.mxu0 0
        %1537 = vmatpush1.bf16.msra.mxu0 0
        %1538 = vmatprep.subr.bf16.mxu0 0
        %1539 = vmatpush1.bf16.msra.mxu0 0
        %1540 = vmatprep.subr.bf16.mxu0 0
        %1541 = vmatpush1.bf16.msra.mxu0 0
        %1542 = vmatprep.subr.bf16.mxu0 0
        %1543 = vmatpush1.bf16.msra.mxu0 0
        %1544 = vmatprep.subr.bf16.mxu0 0
        %1545 = vmatpush1.bf16.msra.mxu0 0
        %1546 = vmatprep.subr.bf16.mxu0 0
        %1547 = vmatpush1.bf16.msra.mxu0 0
        %1548 = vmatprep.subr.bf16.mxu0 0
        %1549 = vmatpush1.bf16.msra.mxu0 0
        %1550 = vmatprep.subr.bf16.mxu0 0
        %1551 = vmatpush1.bf16.msra.mxu0 0
        %1552 = vmatprep.subr.bf16.mxu0 0
        %1553 = vmatpush1.bf16.msra.mxu0 0
        %1554 = vmatprep.subr.bf16.mxu0 0
        %1555 = vmatpush1.bf16.msra.mxu0 0
        %1556 = vmatprep.subr.bf16.mxu0 0
        %1557 = vmatpush1.bf16.msra.mxu0 0
        %1558 = vmatprep.subr.bf16.mxu0 0
        %1559 = vmatpush1.bf16.msra.mxu0 0
        %1560 = vmatprep.mubr.bf16.mxu0 0
        %1561 = vmatmul.mubr.bf16.gmra.mrb[0].mxu0 %v1526
        %v1562 = vpop.f32.mrb[0].mxu0
        %v1563 = vadd.f32 0.0, %v1562
        %v1564 = vpop.f32.mrb[0].mxu0
        %v1565 = vpop.f32.mrb[0].mxu0
        %v1566 = vadd.f32 0.0, %v1565
        %v1567 = vpop.f32.mrb[0].mxu0
        %1568 = vdwg.mxu0
        %v1569 = vadd.f32 %v443, %v1563
        %v1570 = vadd.f32 %v444, %v1566
        %v1571 = vld [vmem:[%s6] sm:$0x1]
        %v1573 = vlaneseq
        %v1574 = vshrl.u32 %v1573, 7
        %v1575 = vsub.s32 0, %v1574
        %v1576 = vrot.slane %v1571, %v1575
        %v1578 = vadd.f32 %v1569, %v1576
        %v1579 = vadd.f32 %v1570, %v1576
        %v1580 = vld [vmem:[%s7] sm:$0x1]
        %v1581 = vld [vmem:[%s8] sm:$0x1]
        %v1582 = vsel %vm447, %v1578, 0.0
        %1583 = vadd.xlane.f32.xlu0 %v1582
        %v1584 = vpop.xlane.xlu0 %1583
        %v1585 = vsel %vm447, %v1579, 0.0
        %1586 = vadd.xlane.f32.xlu0 %v1585
        %v1587 = vpop.xlane.xlu0 %1586
        %v1588 = vmul.f32 %v1584, %v454
        %v1589 = vmul.f32 %v1587, %v454
        %v1590 = vsub.f32 %v1578, %v1588
        %v1591 = vsub.f32 %v1579, %v1589
        %v1592 = vmul.f32 %v1590, %v1590
        %v1593 = vmul.f32 %v1591, %v1591
        %v1594 = vsel %vm447, %v1592, 0.0
        %1595 = vadd.xlane.f32.xlu0 %v1594
        %v1596 = vpop.xlane.xlu0 %1595
        %v1597 = vsel %vm447, %v1593, 0.0
        %1598 = vadd.xlane.f32.xlu0 %v1597
        %v1599 = vpop.xlane.xlu0 %1598
        %v1600 = vmul.f32 %v1596, %v454
        %v1601 = vmul.f32 %v1599, %v454
        %v1602 = vadd.f32 %v1600, 1e-05
        %v1603 = vadd.f32 %v1601, 1e-05
        %v1604 = vrsqrt.pop %v1602
        %v1605 = vrsqrt.pop %v1603
        %v1606 = vmul.f32 %v1590, %v1604
        %v1607 = vmul.f32 %v1591, %v1605
        %v1609 = vlaneseq
        %v1610 = vshrl.u32 %v1609, 7
        %v1611 = vsub.s32 0, %v1610
        %v1612 = vrot.slane %v1580, %v1611
        %v1614 = vmul.f32 %v1606, %v1612
        %v1615 = vmul.f32 %v1607, %v1612
        %v1617 = vlaneseq
        %v1618 = vshrl.u32 %v1617, 7
        %v1619 = vsub.s32 0, %v1618
        %v1620 = vrot.slane %v1581, %v1619
        %v1622 = vadd.f32 %v1614, %v1620
        %v1623 = vadd.f32 %v1615, %v1620
        %v1624 = vld [vmem:[%s9] sm:$0xf]
        %v1625 = vld [vmem:[%s9 + $0x4] sm:$0xf]
        %v1626 = vld [vmem:[%s9 + $0x8] sm:$0xf]
        %v1627 = vld [vmem:[%s9 + $0xc] sm:$0xf]
        %v1628 = vpack.c.bf16 %v1623, %v1622
        %v1629 = vld [vmem:[%s10] sm:$0x1]
        %v1631 = vlaneseq
        %v1632 = vshrl.u32 %v1631, 7
        %v1633 = vsub.s32 0, %v1632
        %v1634 = vrot.slane %v1629, %v1633
        %v1640 = vunpack.c.l.b16 %v1624
        %v1641 = vunpack.c.l.b16 %v1625
        %v1642 = vunpack.c.l.b16 %v1626
        %v1643 = vunpack.c.l.b16 %v1627
        %v1644 = vpack.c.b16 %v1641, %v1640
        %v1645 = vpack.c.b16 %v1643, %v1642
        %v1649 = vsel %vm447, %v1628, 0
        %1651 = vmatprep.subr.bf16.mxu0 0
        %1652 = vmatpush1.bf16.msra.mxu0 %v1644
        %1653 = vmatprep.subr.bf16.mxu0 0
        %1654 = vmatpush1.bf16.msra.mxu0 %v1645
        %1655 = vmatprep.subr.bf16.mxu0 0
        %1656 = vmatpush1.bf16.msra.mxu0 0
        %1657 = vmatprep.subr.bf16.mxu0 0
        %1658 = vmatpush1.bf16.msra.mxu0 0
        %1659 = vmatprep.subr.bf16.mxu0 0
        %1660 = vmatpush1.bf16.msra.mxu0 0
        %1661 = vmatprep.subr.bf16.mxu0 0
        %1662 = vmatpush1.bf16.msra.mxu0 0
        %1663 = vmatprep.subr.bf16.mxu0 0
        %1664 = vmatpush1.bf16.msra.mxu0 0
        %1665 = vmatprep.subr.bf16.mxu0 0
        %1666 = vmatpush1.bf16.msra.mxu0 0
        %1667 = vmatprep.subr.bf16.mxu0 0
        %1668 = vmatpush1.bf16.msra.mxu0 0
        %1669 = vmatprep.subr.bf16.mxu0 0
        %1670 = vmatpush1.bf16.msra.mxu0 0
        %1671 = vmatprep.subr.bf16.mxu0 0
        %1672 = vmatpush1.bf16.msra.mxu0 0
        %1673 = vmatprep.subr.bf16.mxu0 0
        %1674 = vmatpush1.bf16.msra.mxu0 0
        %1675 = vmatprep.subr.bf16.mxu0 0
        %1676 = vmatpush1.bf16.msra.mxu0 0
        %1677 = vmatprep.subr.bf16.mxu0 0
        %1678 = vmatpush1.bf16.msra.mxu0 0
        %1679 = vmatprep.subr.bf16.mxu0 0
        %1680 = vmatpush1.bf16.msra.mxu0 0
        %1681 = vmatprep.subr.bf16.mxu0 0
        %1682 = vmatpush1.bf16.msra.mxu0 0
        %1683 = vmatprep.mubr.bf16.mxu0 0
        %1684 = vmatmul.mubr.bf16.gmra.mrb[0].mxu0 %v1649
        %v1685 = vpop.f32.mrb[0].mxu0
        %v1686 = vadd.f32 %v1634, %v1685
        %v1687 = vpop.f32.mrb[0].mxu0
        %v1688 = vpop.f32.mrb[0].mxu0
        %v1689 = vadd.f32 %v1634, %v1688
        %v1690 = vpop.f32.mrb[0].mxu0
        %1691 = vdwg.mxu0
        %v1692 = vmul.f32 %v1686, 0.5
        %v1693 = vmul.f32 %v1689, 0.5
        %v1694 = vmul.f32 %v1686, 0.044715
        %v1695 = vmul.f32 %v1689, 0.044715
        %v1696 = vmul.f32 %v1694, %v1686
        %v1697 = vmul.f32 %v1695, %v1689
        %v1698 = vmul.f32 %v1696, %v1686
        %v1699 = vmul.f32 %v1697, %v1689
        %v1700 = vadd.f32 %v1686, %v1698
        %v1701 = vadd.f32 %v1689, %v1699
        %v1702 = vmul.f32 %v1700, 0.7978846
        %v1703 = vmul.f32 %v1701, 0.7978846
        %v1704 = vtanh.pop %v1702
        %v1705 = vtanh.pop %v1703
        %v1706 = vadd.f32 %v1704, 1.0
        %v1707 = vadd.f32 %v1705, 1.0
        %v1708 = vmul.f32 %v1692, %v1706
        %v1709 = vmul.f32 %v1693, %v1707
        %v1710 = vld [vmem:[%s11] sm:$0xf]
        %v1711 = vld [vmem:[%s11 + $0x4] sm:$0xf]
        %v1712 = vld [vmem:[%s11 + $0x8] sm:$0xf]
        %v1713 = vld [vmem:[%s11 + $0xc] sm:$0xf]
        %v1714 = vld [vmem:[%s11 + $0x10] sm:$0xf]
        %v1715 = vld [vmem:[%s11 + $0x14] sm:$0xf]
        %v1716 = vld [vmem:[%s11 + $0x18] sm:$0xf]
        %v1717 = vld [vmem:[%s11 + $0x1c] sm:$0xf]
        %v1718 = vld [vmem:[%s11 + $0x20] sm:$0xf]
        %v1719 = vld [vmem:[%s11 + $0x24] sm:$0xf]
        %v1720 = vld [vmem:[%s11 + $0x28] sm:$0xf]
        %v1721 = vld [vmem:[%s11 + $0x2c] sm:$0xf]
        %v1722 = vld [vmem:[%s11 + $0x30] sm:$0xf]
        %v1723 = vld [vmem:[%s11 + $0x34] sm:$0xf]
        %v1724 = vld [vmem:[%s11 + $0x38] sm:$0xf]
        %v1725 = vld [vmem:[%s11 + $0x3c] sm:$0xf]
        %v1726 = vpack.c.bf16 %v1709, %v1708
        %v1743 = vunpack.c.l.b16 %v1710
        %v1744 = vunpack.c.l.b16 %v1711
        %v1745 = vunpack.c.l.b16 %v1712
        %v1746 = vunpack.c.l.b16 %v1713
        %v1747 = vunpack.c.l.b16 %v1714
        %v1748 = vunpack.c.l.b16 %v1715
        %v1749 = vunpack.c.l.b16 %v1716
        %v1750 = vunpack.c.l.b16 %v1717
        %v1751 = vunpack.c.l.b16 %v1718
        %v1752 = vunpack.c.l.b16 %v1719
        %v1753 = vunpack.c.l.b16 %v1720
        %v1754 = vunpack.c.l.b16 %v1721
        %v1755 = vunpack.c.l.b16 %v1722
        %v1756 = vunpack.c.l.b16 %v1723
        %v1757 = vunpack.c.l.b16 %v1724
        %v1758 = vunpack.c.l.b16 %v1725
        %v1759 = vpack.c.b16 %v1744, %v1743
        %v1760 = vpack.c.b16 %v1746, %v1745
        %v1761 = vpack.c.b16 %v1748, %v1747
        %v1762 = vpack.c.b16 %v1750, %v1749
        %v1763 = vpack.c.b16 %v1752, %v1751
        %v1764 = vpack.c.b16 %v1754, %v1753
        %v1765 = vpack.c.b16 %v1756, %v1755
        %v1766 = vpack.c.b16 %v1758, %v1757
        %1775 = vmatprep.subr.bf16.mxu0 0
        %1776 = vmatpush1.bf16.msra.mxu0 %v1759
        %1777 = vmatprep.subr.bf16.mxu0 0
        %1778 = vmatpush1.bf16.msra.mxu0 %v1760
        %1779 = vmatprep.subr.bf16.mxu0 0
        %1780 = vmatpush1.bf16.msra.mxu0 %v1761
        %1781 = vmatprep.subr.bf16.mxu0 0
        %1782 = vmatpush1.bf16.msra.mxu0 %v1762
        %1783 = vmatprep.subr.bf16.mxu0 0
        %1784 = vmatpush1.bf16.msra.mxu0 %v1763
        %1785 = vmatprep.subr.bf16.mxu0 0
        %1786 = vmatpush1.bf16.msra.mxu0 %v1764
        %1787 = vmatprep.subr.bf16.mxu0 0
        %1788 = vmatpush1.bf16.msra.mxu0 %v1765
        %1789 = vmatprep.subr.bf16.mxu0 0
        %1790 = vmatpush1.bf16.msra.mxu0 %v1766
        %1791 = vmatprep.subr.bf16.mxu0 0
        %1792 = vmatpush1.bf16.msra.mxu0 0
        %1793 = vmatprep.subr.bf16.mxu0 0
        %1794 = vmatpush1.bf16.msra.mxu0 0
        %1795 = vmatprep.subr.bf16.mxu0 0
        %1796 = vmatpush1.bf16.msra.mxu0 0
        %1797 = vmatprep.subr.bf16.mxu0 0
        %1798 = vmatpush1.bf16.msra.mxu0 0
        %1799 = vmatprep.subr.bf16.mxu0 0
        %1800 = vmatpush1.bf16.msra.mxu0 0
        %1801 = vmatprep.subr.bf16.mxu0 0
        %1802 = vmatpush1.bf16.msra.mxu0 0
        %1803 = vmatprep.subr.bf16.mxu0 0
        %1804 = vmatpush1.bf16.msra.mxu0 0
        %1805 = vmatprep.subr.bf16.mxu0 0
        %1806 = vmatpush1.bf16.msra.mxu0 0
        %1807 = vmatprep.mubr.bf16.mxu0 0
        %1808 = vmatmul.mubr.bf16.gmra.mrb[0].mxu0 %v1726
        %v1809 = vpop.f32.mrb[0].mxu0
        %v1810 = vadd.f32 0.0, %v1809
        %v1811 = vpop.f32.mrb[0].mxu0
        %v1812 = vpop.f32.mrb[0].mxu0
        %v1813 = vadd.f32 0.0, %v1812
        %v1814 = vpop.f32.mrb[0].mxu0
        %1815 = vdwg.mxu0
        %v1816 = vadd.f32 %v1578, %v1810
        %v1817 = vadd.f32 %v1579, %v1813
        %v1818 = vld [vmem:[%s12] sm:$0x1]
        %v1820 = vlaneseq
        %v1821 = vshrl.u32 %v1820, 7
        %v1822 = vsub.s32 0, %v1821
        %v1823 = vrot.slane %v1818, %v1822
        %v1825 = vadd.f32 %v1816, %v1823
        %v1826 = vadd.f32 %v1817, %v1823
        %1827 = vst.msk [vmem:[%s434] sm:$0xff] %vm447, %v1825
        %1828 = vst.msk [vmem:[%s434 + $0x8] sm:$0xff] %vm447, %v1826
        %s1829 = sand.u32 %s313, 1
        %s1830 = scalar_lea.sflag [#allocation3], %s1829
        %s1831 = sand.u32 %s313, 1
        %s1832 = smul.addr %s1831, 16
        %s1833 = scalar_lea.vmem [#allocation2], %s1832
        // Predicated region
        $region73: #{tpu_custom_call.1} parent=71 // pred_check
          %p1834 = pneg %p323
        $region74: #{tpu_custom_call.1} parent=71 // pred_check_branch
          %1836 = sbr.rel (%p1834) target = $region76
        $region75: #{tpu_custom_call.1} parent=71 // pred_region
          %s1837 = smul.u32 2, %s27
          %s1839 = ssub.s32 256, 256
          %1840 = vsyncadd %s1830, %s1839
          %s1841 = smul.addr %s1837, 128
          %s1842 = scalar_lea.hbm %s13, %s1841
          %s1843 = sshll.u32 %s1833, 4
          %s1844 = int_to_ptr.vmem [resolvable:$true] %s1843
          %1849 = dma.vmem_to_hbm [thread:$0]  %s1844, 256, %s1842, %s1830, 128, 128, 8
        $region76: #{tpu_custom_call.1} parent=71 // pred_fallthru
          _
      $region72: #{tpu_custom_call.1} parent=5 // pred_fallthru
        _
      %p1850 = scmp.le.s32.totalorder 2, %s22
      // Predicated region
      $region77: #{tpu_custom_call.1} parent=5 // pred_check
        %p1851 = pneg %p1850
      $region78: #{tpu_custom_call.1} parent=5 // pred_check_branch
        %1853 = sbr.rel (%p1851) target = $region80
      $region79: #{tpu_custom_call.1} parent=5 // pred_region
        %s1854 = ssub.s32 %s22, 2
        // Predicated region
        $region81: #{tpu_custom_call.1} parent=79 // pred_check
          %p1855 = pneg %p329
        $region82: #{tpu_custom_call.1} parent=79 // pred_check_branch
          %1857 = sbr.rel (%p1855) target = $region84
        $region83: #{tpu_custom_call.1} parent=79 // pred_region
          %s1858 = sand.u32 %s314, 1
          %s1859 = scalar_lea.sflag [#allocation3], %s1858
          %s1860 = sand.u32 %s314, 1
          %s1861 = smul.addr %s1860, 16
          %s1862 = scalar_lea.vmem [#allocation2], %s1861
          %1863 = dma.done %s1859, 256
        $region84: #{tpu_custom_call.1} parent=79 // pred_fallthru
          _
      $region80: #{tpu_custom_call.1} parent=5 // pred_fallthru
        _
    $region6: #{tpu_custom_call.1} parent=1 // loop_footer
      %s26 = sadd.s32 1, %s22
    $region7: #{tpu_custom_call.1} parent=1 // loop_footer_branch
      %21 = sbr.rel target = $region3
    $region8: #{tpu_custom_call.1} parent=1 // loop_exit
      _
    %1864 = vsyncpa [#allocation3], 1
    %s1865 = scalar_lea.sflag [#allocation3], 1
    %1866 = vsyncpa %s1865, 1

</llo_original>
